<compile_context>
chip_gen: v5e
topology: v5e:2x2
jax: 0.10.0
libtpu: 0.0.40
codegen_flags: <defaults>
</compile_context>

<pallas_src>
import functools

import jax
import jax.numpy as jnp
from jax.experimental import pallas as pl
from jax.experimental.pallas import tpu as pltpu


# The 3x3 conv on the 4H x 4W map, re-expressed on the H x W grid of "super-pixels"
# (each super-pixel = 4x4 output pixels x 32 channels packed into 512 lanes as
# lane = 128*py + 32*px + c), touches only the 3x3 neighbourhood (uy, ux) below.
_OFFSETS = ((-1, -1), (-1, 0), (-1, 1),
            (0, -1), (0, 0), (0, 1),
            (1, -1), (1, 0), (1, 1))


def _lane_window(uy, ux):
    """Contiguous lane window [lo, hi) of the packed 512 lanes that can carry a
    non-zero tap for neighbour offset (uy, ux): corners -> 32, y-edges -> 128,
    everything else -> 512.  Trims the K dim of the corresponding tap matrix."""
    pys = (3,) if uy == -1 else (0,) if uy == 1 else (0, 1, 2, 3)
    pxs = (3,) if ux == -1 else (0,) if ux == 1 else (0, 1, 2, 3)
    if len(pys) == 1 and len(pxs) == 1:
        lo = 128 * pys[0] + 32 * pxs[0]
        return lo, lo + 32
    if len(pys) == 1:
        lo = 128 * pys[0]
        return lo, lo + 128
    return 0, 512


# ----------------------------------------------------------------------------
# Fused kernel: whole decoder for ONE batch element (grid axis = batch, parallel).
#   x rows ordered (y, x); lanes = 128 input channels.
#   p_ref scratch: ((H+2)*(W+2), 512) padded super-pixel grid, row = (y+1)*(W+2)+x+1,
#   lane = 128*py + 32*px + c.
# ----------------------------------------------------------------------------
def _decoder_kernel(x_ref, w1_ref, b1_ref, w2_ref, b2_ref,
                    t0, t1, t2, t3, t4, t5, t6, t7, t8,
                    b3_ref, o_ref, p_ref, *, H, W):
    f32 = jnp.float32
    P = W + 2                                  # padded row pitch
    t_refs = (t0, t1, t2, t3, t4, t5, t6, t7, t8)

    # ---- layer 1: ConvTranspose2d(128->64, k2, s2) + ReLU (one matmul) -----
    a1 = jnp.dot(x_ref[...], w1_ref[...], preferred_element_type=f32)
    a1 = jnp.maximum(a1 + b1_ref[...], 0.0)    # (H*W, 256), cols (dy1, dx1, c1)

    # ---- zero ONLY the border rows of the super-pixel scratch --------------
    # (interior rows are fully overwritten right below; borders provide the
    #  zero padding of the 3x3 'same' conv)
    p_ref[0:W + 3, :] = jnp.zeros((W + 3, 512), f32)
    for y in range(H - 1):
        r = (y + 1) * P + W + 1                # right pad of row y + left pad of y+1
        p_ref[r:r + 2, :] = jnp.zeros((2, 512), f32)
    p_ref[H * P + W + 1:(H + 2) * P, :] = jnp.zeros((W + 3, 512), f32)

    # ---- layer 2: ConvTranspose2d(64->32, k2, s2) + ReLU --------------------
    # dx1 is folded into the block-diagonal (128,256) W2big, so there is ONE
    # matmul per dy1 and the scratch stores are 256-lane-aligned slices
    # (no lane-unaligned concats, no pixel-shuffle scatter).
    for dy1 in range(2):
        g = jnp.dot(a1[:, 128 * dy1:128 * (dy1 + 1)], w2_ref[...],
                    preferred_element_type=f32)
        g = jnp.maximum(g + b2_ref[...], 0.0)  # (H*W, 256), cols (dy2, dx1, dx2, c2)
        for y in range(H):
            r = (y + 1) * P + 1
            p_ref[r:r + W, 256 * dy1:256 * (dy1 + 1)] = g[y * W:(y + 1) * W, :]

    # ---- layer 3: Conv2d(32->Co, k3, pad=1) ---------------------------------
    # 9 shifted-window matmuls against small O(1) tap matrices.  Every LHS is a
    # contiguous slice of the scratch (no gathers, no O(W^2) banded weights);
    # the accumulator starts from the first dot and the bias is folded into the
    # single contiguous output store.
    r0 = P + 1                                 # first interior row
    nr = H * P - 2                             # row span covering all interiors
    acc = None
    for (uy, ux), t_ref in zip(_OFFSETS, t_refs):
        lo, hi = _lane_window(uy, ux)
        d = uy * P + ux
        lhs = p_ref[r0 + d:r0 + d + nr, lo:hi]
        c = jnp.dot(lhs, t_ref[...], preferred_element_type=f32)
        acc = c if acc is None else acc + c
    o_ref[...] = acc + b3_ref[...]             # rows = padded super-pixel rows,
    #                                            cols = (qy, qx, co)


# ----------------------------------------------------------------------------
# One-time weight preparation (hoisted off the per-call path).  All produced
# arrays are O(1) in the spatial input size (no more O(W^2) banded matrices).
# ----------------------------------------------------------------------------
def prepare_params(params):
    w1, b1 = params["w1"], params["b1"]        # (128, 64, 2, 2), (64,)
    w2, b2 = params["w2"], params["b2"]        # (64, 32, 2, 2), (32,)
    w3, b3 = params["w3"], params["b3"]        # (Co, 32, 3, 3), (Co,)
    Co = w3.shape[0]
    f32 = jnp.float32
    # NOTE: for v6e/v7x one can cast W1m/W2big/taps (and x in the wrapper) to
    # bf16 and keep the f32 accumulate; kept f32 here for the tight self-check.

    # layer 1: (128, 256), column order (dy1, dx1, c1out)
    W1m = jnp.transpose(w1, (0, 2, 3, 1)).reshape(128, 256).astype(f32)
    b1t = jnp.tile(b1, 4).reshape(1, 256).astype(f32)

    # layer 2: block-diagonal (128, 256); rows (dx1, c1), cols (dy2, dx1, dx2, c2)
    base = jnp.transpose(w2, (0, 2, 3, 1)).reshape(64, 128).astype(f32)
    W2big = jnp.zeros((128, 256), f32)
    for dx1 in range(2):
        for dy2 in range(2):
            W2big = W2big.at[
                64 * dx1:64 * (dx1 + 1),
                128 * dy2 + 64 * dx1:128 * dy2 + 64 * dx1 + 64,
            ].set(base[:, 64 * dy2:64 * (dy2 + 1)])
    b2big = jnp.tile(b2, 8).reshape(1, 256).astype(f32)

    # layer 3: one small tap matrix per low-res neighbour offset.
    #   T[(py,px,c), (qy,qx,co)] = w3[co, c, dy+1, dx+1]
    #   with dy = py - qy + 4*uy, dx = px - qx + 4*ux, both in {-1, 0, 1}.
    def sel(u, d):
        m = [[0.0] * 4 for _ in range(4)]
        ok = False
        for q in range(4):
            p = q + d - 4 * u
            if 0 <= p < 4:
                m[p][q] = 1.0
                ok = True
        return jnp.array(m, f32), ok

    taps = []
    for (uy, ux) in _OFFSETS:
        t_full = jnp.zeros((512, 16 * Co), f32)
        for dy in (-1, 0, 1):
            my, oky = sel(uy, dy)
            if not oky:
                continue
            for dx in (-1, 0, 1):
                mx, okx = sel(ux, dx)
                if not okx:
                    continue
                tap = jnp.transpose(w3[:, :, dy + 1, dx + 1]).astype(f32)  # (32, Co)
                t_full = t_full + jnp.kron(jnp.kron(my, mx), tap)
        lo, hi = _lane_window(uy, ux)
        taps.append(t_full[lo:hi, :])          # K-trimmed to its lane window
    b3r = jnp.tile(b3.astype(f32), 16).reshape(1, 16 * Co)

    return dict(W1m=W1m, b1t=b1t, W2big=W2big, b2big=b2big,
                taps=tuple(taps), b3r=b3r)


# ----------------------------------------------------------------------------
# Public forward: NCHW in, NCHW out.  One pallas_call with a parallel batch grid;
# wrapper ops are pure layout plumbing on the tiny input/output.
# ----------------------------------------------------------------------------
def grid_decoder_forward(x_nchw, prep):
    B, Cin, H, W = x_nchw.shape
    assert Cin == 128, "GridDecoder expects 128 input channels"
    Co = prep["b3r"].shape[1] // 16
    f32 = jnp.float32
    HW = H * W
    P = W + 2
    NR = H * P - 2

    # rows ordered (y, x); lanes = 128 input channels
    x_rows = jnp.transpose(x_nchw, (0, 2, 3, 1)).reshape(B, HW, 128).astype(f32)

    kernel = functools.partial(_decoder_kernel, H=H, W=W)

    def fixed(shape):
        return pl.BlockSpec(shape, lambda b: (0,) * len(shape))

    in_specs = [pl.BlockSpec((None, HW, 128), lambda b: (b, 0, 0)),   # x (per batch)
                fixed((128, 256)), fixed((1, 256)),                   # W1m, b1
                fixed((128, 256)), fixed((1, 256))]                   # W2big, b2
    in_specs += [fixed(t.shape) for t in prep["taps"]]                # 9 tap matrices
    in_specs += [fixed((1, 16 * Co))]                                 # b3

    out_raw = pl.pallas_call(
        kernel,
        out_shape=jax.ShapeDtypeStruct((B, NR, 16 * Co), f32),
        grid_spec=pltpu.PrefetchScalarGridSpec(
            num_scalar_prefetch=0,
            grid=(B,),                                    # batch-parallel on v7x,
            in_specs=in_specs,                            # pipelined everywhere
            out_specs=pl.BlockSpec((None, NR, 16 * Co), lambda b: (b, 0, 0)),
            scratch_shapes=[pltpu.VMEM(((H + 2) * (W + 2), 512), f32)],
        ),
        compiler_params=pltpu.CompilerParams(
            dimension_semantics=("parallel",),
            vmem_limit_bytes=32 * 1024 * 1024),
    )(x_rows, prep["W1m"], prep["b1t"], prep["W2big"], prep["b2big"],
      *prep["taps"], prep["b3r"])

    # un-shuffle (wrapper-side layout plumbing on the tiny output): pick the
    # interior rows of the padded super-pixel grid and expand (qy, qx) to space.
    sel = (jnp.arange(H)[:, None] * P + jnp.arange(W)[None, :]).reshape(-1)
    out = out_raw[:, sel, :]                              # (B, H*W, 16*Co)
    out = out.reshape(B, H, W, 4, 4, Co)                  # (b, y, x, qy, qx, co)
    out = jnp.transpose(out, (0, 5, 1, 3, 2, 4)).reshape(B, Co, 4 * H, 4 * W)
    return out


# ----------------------------------------------------------------------------
# Plain-JAX reference (same math as the PyTorch module), high precision matmuls.
# ----------------------------------------------------------------------------
def _ref_conv_transpose_2x2_s2(x_nhwc, w, b, relu):
    B, H, W, Cin = x_nhwc.shape
    Cout = w.shape[1]
    w_mat = jnp.transpose(w, (0, 2, 3, 1)).reshape(Cin, 4 * Cout)
    y = jnp.dot(x_nhwc.reshape(-1, Cin), w_mat,
                precision=jax.lax.Precision.HIGHEST) + jnp.tile(b, 4)
    if relu:
        y = jnp.maximum(y, 0.0)
    y = y.reshape(B, H, W, 2, 2, Cout)
    return jnp.transpose(y, (0, 1, 3, 2, 4, 5)).reshape(B, 2 * H, 2 * W, Cout)


def _ref_conv3x3_same(x_nhwc, w, b):
    B, H, W, Cin = x_nhwc.shape
    Cout = w.shape[0]
    xp = jnp.pad(x_nhwc, ((0, 0), (1, 1), (1, 1), (0, 0)))
    patches = jnp.concatenate(
        [xp[:, dy:dy + H, dx:dx + W, :] for dy in range(3) for dx in range(3)],
        axis=-1)
    w_mat = jnp.transpose(w, (2, 3, 1, 0)).reshape(9 * Cin, Cout)
    y = jnp.dot(patches.reshape(-1, 9 * Cin), w_mat,
                precision=jax.lax.Precision.HIGHEST) + b
    return y.reshape(B, H, W, Cout)


def grid_decoder_reference(x_nchw, params):
    x = jnp.transpose(x_nchw, (0, 2, 3, 1))
    x = _ref_conv_transpose_2x2_s2(x, params["w1"], params["b1"], True)
    x = _ref_conv_transpose_2x2_s2(x, params["w2"], params["b2"], True)
    x = _ref_conv3x3_same(x, params["w3"], params["b3"])
    return jnp.transpose(x, (0, 3, 1, 2))


# ----------------------------------------------------------------------------
# Deterministic synthetic parameters (shapes match the PyTorch module).
# ----------------------------------------------------------------------------
def init_params(key, output_channels=1):
    ks = jax.random.split(key, 6)

    def u(k, shape, fan_in):
        bound = 1.0 / jnp.sqrt(fan_in)
        return jax.random.uniform(k, shape, jnp.float32, -bound, bound)

    return {
        "w1": u(ks[0], (128, 64, 2, 2), 128 * 4),
        "b1": u(ks[1], (64,), 128 * 4),
        "w2": u(ks[2], (64, 32, 2, 2), 64 * 4),
        "b2": u(ks[3], (32,), 64 * 4),
        "w3": u(ks[4], (output_channels, 32, 3, 3), 32 * 9),
        "b3": u(ks[5], (output_channels,), 32 * 9),
    }


if __name__ == "__main__":
    key = jax.random.PRNGKey(0)
    kx, kp = jax.random.split(key)

    B, Cin, H, W = 2, 128, 4, 4
    x = jax.random.normal(kx, (B, Cin, H, W), jnp.float32)
    params = init_params(kp, output_channels=1)
    prep = prepare_params(params)

    fwd = jax.jit(grid_decoder_forward)
    out = jax.block_until_ready(fwd(x, prep))
    assert out.shape == (B, 1, 4 * H, 4 * W), out.shape

    ref = jax.block_until_ready(grid_decoder_reference(x, params))
    err = float(jnp.max(jnp.abs(out - ref)))
    # All-f32 pipeline: tolerance tightened vs. the previous 1e-3 (layout bugs
    # show up at O(1e-2)+); kept a margin for MXU f32 accumulation-order diffs.
    assert jnp.allclose(out, ref, atol=5e-4, rtol=5e-4), f"max abs err = {err}"

    print("KERNEL_OK")
</pallas_src>

<mosaic_0001>
module attributes {stable_mosaic.version = 11 : i64} {
  func.func @_decoder_kernel(%arg0: i32, %arg1: memref<1x16x128xf32, #tpu.memory_space<vmem>>, %arg2: memref<128x256xf32, #tpu.memory_space<vmem>>, %arg3: memref<1x256xf32, #tpu.memory_space<vmem>>, %arg4: memref<128x256xf32, #tpu.memory_space<vmem>>, %arg5: memref<1x256xf32, #tpu.memory_space<vmem>>, %arg6: memref<32x16xf32, #tpu.memory_space<vmem>>, %arg7: memref<128x16xf32, #tpu.memory_space<vmem>>, %arg8: memref<32x16xf32, #tpu.memory_space<vmem>>, %arg9: memref<512x16xf32, #tpu.memory_space<vmem>>, %arg10: memref<512x16xf32, #tpu.memory_space<vmem>>, %arg11: memref<512x16xf32, #tpu.memory_space<vmem>>, %arg12: memref<32x16xf32, #tpu.memory_space<vmem>>, %arg13: memref<128x16xf32, #tpu.memory_space<vmem>>, %arg14: memref<32x16xf32, #tpu.memory_space<vmem>>, %arg15: memref<1x16xf32, #tpu.memory_space<vmem>>, %arg16: memref<1x22x16xf32, #tpu.memory_space<vmem>>, %arg17: memref<36x512xf32, #tpu.memory_space<vmem>>) attributes {dimension_semantics = [#tpu.dimension_semantics<parallel>], iteration_bounds = array<i64: 2>, scalar_prefetch = 0 : i64, scratch_operands = 1 : i64, tpu.core_type = #tpu.core_type<tc>, window_params = [{transform_indices = @transform_0, window_bounds = array<i64: 1, 16, 128>}, {pipeline_mode = #tpu.pipeline_mode<synchronous>, transform_indices = @transform_1, window_bounds = array<i64: 128, 256>}, {pipeline_mode = #tpu.pipeline_mode<synchronous>, transform_indices = @transform_2, window_bounds = array<i64: 1, 256>}, {pipeline_mode = #tpu.pipeline_mode<synchronous>, transform_indices = @transform_3, window_bounds = array<i64: 128, 256>}, {pipeline_mode = #tpu.pipeline_mode<synchronous>, transform_indices = @transform_4, window_bounds = array<i64: 1, 256>}, {pipeline_mode = #tpu.pipeline_mode<synchronous>, transform_indices = @transform_5, window_bounds = array<i64: 32, 16>}, {pipeline_mode = #tpu.pipeline_mode<synchronous>, transform_indices = @transform_6, window_bounds = array<i64: 128, 16>}, {pipeline_mode = #tpu.pipeline_mode<synchronous>, transform_indices = @transform_7, window_bounds = array<i64: 32, 16>}, {pipeline_mode = #tpu.pipeline_mode<synchronous>, transform_indices = @transform_8, window_bounds = array<i64: 512, 16>}, {pipeline_mode = #tpu.pipeline_mode<synchronous>, transform_indices = @transform_9, window_bounds = array<i64: 512, 16>}, {pipeline_mode = #tpu.pipeline_mode<synchronous>, transform_indices = @transform_10, window_bounds = array<i64: 512, 16>}, {pipeline_mode = #tpu.pipeline_mode<synchronous>, transform_indices = @transform_11, window_bounds = array<i64: 32, 16>}, {pipeline_mode = #tpu.pipeline_mode<synchronous>, transform_indices = @transform_12, window_bounds = array<i64: 128, 16>}, {pipeline_mode = #tpu.pipeline_mode<synchronous>, transform_indices = @transform_13, window_bounds = array<i64: 32, 16>}, {pipeline_mode = #tpu.pipeline_mode<synchronous>, transform_indices = @transform_14, window_bounds = array<i64: 1, 16>}, {transform_indices = @transform_15, window_bounds = array<i64: 1, 22, 16>}]} {
    %c0 = arith.constant 0 : index
    %c0_0 = arith.constant 0 : index
    %c0_1 = arith.constant 0 : index
    %0 = vector.load %arg1[%c0, %c0_0, %c0_1] : memref<1x16x128xf32, #tpu.memory_space<vmem>>, vector<1x16x128xf32>
    %1 = vector.shape_cast %0 : vector<1x16x128xf32> to vector<16x128xf32>
    %c0_2 = arith.constant 0 : index
    %c0_3 = arith.constant 0 : index
    %2 = vector.load %arg2[%c0_2, %c0_3] : memref<128x256xf32, #tpu.memory_space<vmem>>, vector<128x256xf32>
    %cst = arith.constant dense<0.000000e+00> : vector<16x256xf32>
    %3 = tpu.matmul %1, %2, %cst {dimension_numbers = #tpu.dot_dimension_numbers<[1], [0], [0], [1], [0, 0, 1, 1], [], []>} : vector<16x128xf32>, vector<128x256xf32>, vector<16x256xf32> -> vector<16x256xf32>
    %c0_4 = arith.constant 0 : index
    %c0_5 = arith.constant 0 : index
    %4 = vector.load %arg3[%c0_4, %c0_5] : memref<1x256xf32, #tpu.memory_space<vmem>>, vector<1x256xf32>
    %5 = vector.broadcast %4 : vector<1x256xf32> to vector<16x256xf32>
    %6 = arith.addf %3, %5 : vector<16x256xf32>
    %cst_6 = arith.constant 0.000000e+00 : f32
    %7 = vector.broadcast %cst_6 : f32 to vector<16x256xf32>
    %8 = arith.maximumf %6, %7 : vector<16x256xf32>
    %cst_7 = arith.constant 0.000000e+00 : f32
    %9 = vector.broadcast %cst_7 : f32 to vector<7x512xf32>
    %c0_8 = arith.constant 0 : index
    %c0_9 = arith.constant 0 : index
    %10 = vector.load %arg17[%c0_8, %c0_9] : memref<36x512xf32, #tpu.memory_space<vmem>>, vector<7x512xf32>
    tpu.vector_store %arg17[%c0_8, %c0_9], %9 {strides = array<i32>} : memref<36x512xf32, #tpu.memory_space<vmem>>, vector<7x512xf32>,
    %cst_10 = arith.constant 0.000000e+00 : f32
    %11 = vector.broadcast %cst_10 : f32 to vector<2x512xf32>
    %c11 = arith.constant 11 : index
    %c0_11 = arith.constant 0 : index
    %12 = vector.load %arg17[%c11, %c0_11] : memref<36x512xf32, #tpu.memory_space<vmem>>, vector<2x512xf32>
    tpu.vector_store %arg17[%c11, %c0_11], %11 {strides = array<i32>} : memref<36x512xf32, #tpu.memory_space<vmem>>, vector<2x512xf32>,
    %cst_12 = arith.constant 0.000000e+00 : f32
    %13 = vector.broadcast %cst_12 : f32 to vector<2x512xf32>
    %c17 = arith.constant 17 : index
    %c0_13 = arith.constant 0 : index
    %14 = vector.load %arg17[%c17, %c0_13] : memref<36x512xf32, #tpu.memory_space<vmem>>, vector<2x512xf32>
    tpu.vector_store %arg17[%c17, %c0_13], %13 {strides = array<i32>} : memref<36x512xf32, #tpu.memory_space<vmem>>, vector<2x512xf32>,
    %cst_14 = arith.constant 0.000000e+00 : f32
    %15 = vector.broadcast %cst_14 : f32 to vector<2x512xf32>
    %c23 = arith.constant 23 : index
    %c0_15 = arith.constant 0 : index
    %16 = vector.load %arg17[%c23, %c0_15] : memref<36x512xf32, #tpu.memory_space<vmem>>, vector<2x512xf32>
    tpu.vector_store %arg17[%c23, %c0_15], %15 {strides = array<i32>} : memref<36x512xf32, #tpu.memory_space<vmem>>, vector<2x512xf32>,
    %cst_16 = arith.constant 0.000000e+00 : f32
    %17 = vector.broadcast %cst_16 : f32 to vector<7x512xf32>
    %c29 = arith.constant 29 : index
    %c0_17 = arith.constant 0 : index
    %18 = vector.load %arg17[%c29, %c0_17] : memref<36x512xf32, #tpu.memory_space<vmem>>, vector<7x512xf32>
    tpu.vector_store %arg17[%c29, %c0_17], %17 {strides = array<i32>} : memref<36x512xf32, #tpu.memory_space<vmem>>, vector<7x512xf32>,
    %19 = vector.extract_strided_slice %8 {offsets = [0, 0], sizes = [16, 128], strides = [1, 1]} : vector<16x256xf32> to vector<16x128xf32>
    %c0_18 = arith.constant 0 : index
    %c0_19 = arith.constant 0 : index
    %20 = vector.load %arg4[%c0_18, %c0_19] : memref<128x256xf32, #tpu.memory_space<vmem>>, vector<128x256xf32>
    %cst_20 = arith.constant dense<0.000000e+00> : vector<16x256xf32>
    %21 = tpu.matmul %19, %20, %cst_20 {dimension_numbers = #tpu.dot_dimension_numbers<[1], [0], [0], [1], [0, 0, 1, 1], [], []>} : vector<16x128xf32>, vector<128x256xf32>, vector<16x256xf32> -> vector<16x256xf32>
    %c0_21 = arith.constant 0 : index
    %c0_22 = arith.constant 0 : index
    %22 = vector.load %arg5[%c0_21, %c0_22] : memref<1x256xf32, #tpu.memory_space<vmem>>, vector<1x256xf32>
    %23 = vector.broadcast %22 : vector<1x256xf32> to vector<16x256xf32>
    %24 = arith.addf %21, %23 : vector<16x256xf32>
    %cst_23 = arith.constant 0.000000e+00 : f32
    %25 = vector.broadcast %cst_23 : f32 to vector<16x256xf32>
    %26 = arith.maximumf %24, %25 : vector<16x256xf32>
    %27 = vector.extract_strided_slice %26 {offsets = [0, 0], sizes = [4, 256], strides = [1, 1]} : vector<16x256xf32> to vector<4x256xf32>
    %c7 = arith.constant 7 : index
    %c0_24 = arith.constant 0 : index
    %28 = vector.load %arg17[%c7, %c0_24] : memref<36x512xf32, #tpu.memory_space<vmem>>, vector<4x256xf32>
    tpu.vector_store %arg17[%c7, %c0_24], %27 {strides = array<i32>} : memref<36x512xf32, #tpu.memory_space<vmem>>, vector<4x256xf32>,
    %29 = vector.extract_strided_slice %26 {offsets = [4, 0], sizes = [4, 256], strides = [1, 1]} : vector<16x256xf32> to vector<4x256xf32>
    %c13 = arith.constant 13 : index
    %c0_25 = arith.constant 0 : index
    %30 = vector.load %arg17[%c13, %c0_25] : memref<36x512xf32, #tpu.memory_space<vmem>>, vector<4x256xf32>
    tpu.vector_store %arg17[%c13, %c0_25], %29 {strides = array<i32>} : memref<36x512xf32, #tpu.memory_space<vmem>>, vector<4x256xf32>,
    %31 = vector.extract_strided_slice %26 {offsets = [8, 0], sizes = [4, 256], strides = [1, 1]} : vector<16x256xf32> to vector<4x256xf32>
    %c19 = arith.constant 19 : index
    %c0_26 = arith.constant 0 : index
    %32 = vector.load %arg17[%c19, %c0_26] : memref<36x512xf32, #tpu.memory_space<vmem>>, vector<4x256xf32>
    tpu.vector_store %arg17[%c19, %c0_26], %31 {strides = array<i32>} : memref<36x512xf32, #tpu.memory_space<vmem>>, vector<4x256xf32>,
    %33 = vector.extract_strided_slice %26 {offsets = [12, 0], sizes = [4, 256], strides = [1, 1]} : vector<16x256xf32> to vector<4x256xf32>
    %c25 = arith.constant 25 : index
    %c0_27 = arith.constant 0 : index
    %34 = vector.load %arg17[%c25, %c0_27] : memref<36x512xf32, #tpu.memory_space<vmem>>, vector<4x256xf32>
    tpu.vector_store %arg17[%c25, %c0_27], %33 {strides = array<i32>} : memref<36x512xf32, #tpu.memory_space<vmem>>, vector<4x256xf32>,
    %35 = vector.extract_strided_slice %8 {offsets = [0, 128], sizes = [16, 128], strides = [1, 1]} : vector<16x256xf32> to vector<16x128xf32>
    %c0_28 = arith.constant 0 : index
    %c0_29 = arith.constant 0 : index
    %36 = vector.load %arg4[%c0_28, %c0_29] : memref<128x256xf32, #tpu.memory_space<vmem>>, vector<128x256xf32>
    %cst_30 = arith.constant dense<0.000000e+00> : vector<16x256xf32>
    %37 = tpu.matmul %35, %36, %cst_30 {dimension_numbers = #tpu.dot_dimension_numbers<[1], [0], [0], [1], [0, 0, 1, 1], [], []>} : vector<16x128xf32>, vector<128x256xf32>, vector<16x256xf32> -> vector<16x256xf32>
    %c0_31 = arith.constant 0 : index
    %c0_32 = arith.constant 0 : index
    %38 = vector.load %arg5[%c0_31, %c0_32] : memref<1x256xf32, #tpu.memory_space<vmem>>, vector<1x256xf32>
    %39 = vector.broadcast %38 : vector<1x256xf32> to vector<16x256xf32>
    %40 = arith.addf %37, %39 : vector<16x256xf32>
    %cst_33 = arith.constant 0.000000e+00 : f32
    %41 = vector.broadcast %cst_33 : f32 to vector<16x256xf32>
    %42 = arith.maximumf %40, %41 : vector<16x256xf32>
    %43 = vector.extract_strided_slice %42 {offsets = [0, 0], sizes = [4, 256], strides = [1, 1]} : vector<16x256xf32> to vector<4x256xf32>
    %c7_34 = arith.constant 7 : index
    %c256 = arith.constant 256 : index
    %44 = vector.load %arg17[%c7_34, %c256] : memref<36x512xf32, #tpu.memory_space<vmem>>, vector<4x256xf32>
    tpu.vector_store %arg17[%c7_34, %c256], %43 {strides = array<i32>} : memref<36x512xf32, #tpu.memory_space<vmem>>, vector<4x256xf32>,
    %45 = vector.extract_strided_slice %42 {offsets = [4, 0], sizes = [4, 256], strides = [1, 1]} : vector<16x256xf32> to vector<4x256xf32>
    %c13_35 = arith.constant 13 : index
    %c256_36 = arith.constant 256 : index
    %46 = vector.load %arg17[%c13_35, %c256_36] : memref<36x512xf32, #tpu.memory_space<vmem>>, vector<4x256xf32>
    tpu.vector_store %arg17[%c13_35, %c256_36], %45 {strides = array<i32>} : memref<36x512xf32, #tpu.memory_space<vmem>>, vector<4x256xf32>,
    %47 = vector.extract_strided_slice %42 {offsets = [8, 0], sizes = [4, 256], strides = [1, 1]} : vector<16x256xf32> to vector<4x256xf32>
    %c19_37 = arith.constant 19 : index
    %c256_38 = arith.constant 256 : index
    %48 = vector.load %arg17[%c19_37, %c256_38] : memref<36x512xf32, #tpu.memory_space<vmem>>, vector<4x256xf32>
    tpu.vector_store %arg17[%c19_37, %c256_38], %47 {strides = array<i32>} : memref<36x512xf32, #tpu.memory_space<vmem>>, vector<4x256xf32>,
    %49 = vector.extract_strided_slice %42 {offsets = [12, 0], sizes = [4, 256], strides = [1, 1]} : vector<16x256xf32> to vector<4x256xf32>
    %c25_39 = arith.constant 25 : index
    %c256_40 = arith.constant 256 : index
    %50 = vector.load %arg17[%c25_39, %c256_40] : memref<36x512xf32, #tpu.memory_space<vmem>>, vector<4x256xf32>
    tpu.vector_store %arg17[%c25_39, %c256_40], %49 {strides = array<i32>} : memref<36x512xf32, #tpu.memory_space<vmem>>, vector<4x256xf32>,
    %c0_41 = arith.constant 0 : index
    %c480 = arith.constant 480 : index
    %51 = vector.load %arg17[%c0_41, %c480] : memref<36x512xf32, #tpu.memory_space<vmem>>, vector<22x32xf32>
    %c0_42 = arith.constant 0 : index
    %c0_43 = arith.constant 0 : index
    %52 = vector.load %arg6[%c0_42, %c0_43] : memref<32x16xf32, #tpu.memory_space<vmem>>, vector<32x16xf32>
    %cst_44 = arith.constant dense<0.000000e+00> : vector<22x16xf32>
    %53 = tpu.matmul %51, %52, %cst_44 {dimension_numbers = #tpu.dot_dimension_numbers<[1], [0], [0], [1], [0, 0, 1, 1], [], []>} : vector<22x32xf32>, vector<32x16xf32>, vector<22x16xf32> -> vector<22x16xf32>
    %c1 = arith.constant 1 : index
    %c384 = arith.constant 384 : index
    %54 = vector.load %arg17[%c1, %c384] : memref<36x512xf32, #tpu.memory_space<vmem>>, vector<22x128xf32>
    %c0_45 = arith.constant 0 : index
    %c0_46 = arith.constant 0 : index
    %55 = vector.load %arg7[%c0_45, %c0_46] : memref<128x16xf32, #tpu.memory_space<vmem>>, vector<128x16xf32>
    %cst_47 = arith.constant dense<0.000000e+00> : vector<22x16xf32>
    %56 = tpu.matmul %54, %55, %cst_47 {dimension_numbers = #tpu.dot_dimension_numbers<[1], [0], [0], [1], [0, 0, 1, 1], [], []>} : vector<22x128xf32>, vector<128x16xf32>, vector<22x16xf32> -> vector<22x16xf32>
    %57 = arith.addf %53, %56 : vector<22x16xf32>
    %c2 = arith.constant 2 : index
    %c384_48 = arith.constant 384 : index
    %58 = vector.load %arg17[%c2, %c384_48] : memref<36x512xf32, #tpu.memory_space<vmem>>, vector<22x32xf32>
    %c0_49 = arith.constant 0 : index
    %c0_50 = arith.constant 0 : index
    %59 = vector.load %arg8[%c0_49, %c0_50] : memref<32x16xf32, #tpu.memory_space<vmem>>, vector<32x16xf32>
    %cst_51 = arith.constant dense<0.000000e+00> : vector<22x16xf32>
    %60 = tpu.matmul %58, %59, %cst_51 {dimension_numbers = #tpu.dot_dimension_numbers<[1], [0], [0], [1], [0, 0, 1, 1], [], []>} : vector<22x32xf32>, vector<32x16xf32>, vector<22x16xf32> -> vector<22x16xf32>
    %61 = arith.addf %57, %60 : vector<22x16xf32>
    %c6 = arith.constant 6 : index
    %c0_52 = arith.constant 0 : index
    %62 = vector.load %arg17[%c6, %c0_52] : memref<36x512xf32, #tpu.memory_space<vmem>>, vector<22x512xf32>
    %c0_53 = arith.constant 0 : index
    %c0_54 = arith.constant 0 : index
    %63 = vector.load %arg9[%c0_53, %c0_54] : memref<512x16xf32, #tpu.memory_space<vmem>>, vector<512x16xf32>
    %cst_55 = arith.constant dense<0.000000e+00> : vector<22x16xf32>
    %64 = tpu.matmul %62, %63, %cst_55 {dimension_numbers = #tpu.dot_dimension_numbers<[1], [0], [0], [1], [0, 0, 1, 1], [], []>} : vector<22x512xf32>, vector<512x16xf32>, vector<22x16xf32> -> vector<22x16xf32>
    %65 = arith.addf %61, %64 : vector<22x16xf32>
    %c7_56 = arith.constant 7 : index
    %c0_57 = arith.constant 0 : index
    %66 = vector.load %arg17[%c7_56, %c0_57] : memref<36x512xf32, #tpu.memory_space<vmem>>, vector<22x512xf32>
    %c0_58 = arith.constant 0 : index
    %c0_59 = arith.constant 0 : index
    %67 = vector.load %arg10[%c0_58, %c0_59] : memref<512x16xf32, #tpu.memory_space<vmem>>, vector<512x16xf32>
    %cst_60 = arith.constant dense<0.000000e+00> : vector<22x16xf32>
    %68 = tpu.matmul %66, %67, %cst_60 {dimension_numbers = #tpu.dot_dimension_numbers<[1], [0], [0], [1], [0, 0, 1, 1], [], []>} : vector<22x512xf32>, vector<512x16xf32>, vector<22x16xf32> -> vector<22x16xf32>
    %69 = arith.addf %65, %68 : vector<22x16xf32>
    %c8 = arith.constant 8 : index
    %c0_61 = arith.constant 0 : index
    %70 = vector.load %arg17[%c8, %c0_61] : memref<36x512xf32, #tpu.memory_space<vmem>>, vector<22x512xf32>
    %c0_62 = arith.constant 0 : index
    %c0_63 = arith.constant 0 : index
    %71 = vector.load %arg11[%c0_62, %c0_63] : memref<512x16xf32, #tpu.memory_space<vmem>>, vector<512x16xf32>
    %cst_64 = arith.constant dense<0.000000e+00> : vector<22x16xf32>
    %72 = tpu.matmul %70, %71, %cst_64 {dimension_numbers = #tpu.dot_dimension_numbers<[1], [0], [0], [1], [0, 0, 1, 1], [], []>} : vector<22x512xf32>, vector<512x16xf32>, vector<22x16xf32> -> vector<22x16xf32>
    %73 = arith.addf %69, %72 : vector<22x16xf32>
    %c12 = arith.constant 12 : index
    %c96 = arith.constant 96 : index
    %74 = vector.load %arg17[%c12, %c96] : memref<36x512xf32, #tpu.memory_space<vmem>>, vector<22x32xf32>
    %c0_65 = arith.constant 0 : index
    %c0_66 = arith.constant 0 : index
    %75 = vector.load %arg12[%c0_65, %c0_66] : memref<32x16xf32, #tpu.memory_space<vmem>>, vector<32x16xf32>
    %cst_67 = arith.constant dense<0.000000e+00> : vector<22x16xf32>
    %76 = tpu.matmul %74, %75, %cst_67 {dimension_numbers = #tpu.dot_dimension_numbers<[1], [0], [0], [1], [0, 0, 1, 1], [], []>} : vector<22x32xf32>, vector<32x16xf32>, vector<22x16xf32> -> vector<22x16xf32>
    %77 = arith.addf %73, %76 : vector<22x16xf32>
    %c13_68 = arith.constant 13 : index
    %c0_69 = arith.constant 0 : index
    %78 = vector.load %arg17[%c13_68, %c0_69] : memref<36x512xf32, #tpu.memory_space<vmem>>, vector<22x128xf32>
    %c0_70 = arith.constant 0 : index
    %c0_71 = arith.constant 0 : index
    %79 = vector.load %arg13[%c0_70, %c0_71] : memref<128x16xf32, #tpu.memory_space<vmem>>, vector<128x16xf32>
    %cst_72 = arith.constant dense<0.000000e+00> : vector<22x16xf32>
    %80 = tpu.matmul %78, %79, %cst_72 {dimension_numbers = #tpu.dot_dimension_numbers<[1], [0], [0], [1], [0, 0, 1, 1], [], []>} : vector<22x128xf32>, vector<128x16xf32>, vector<22x16xf32> -> vector<22x16xf32>
    %81 = arith.addf %77, %80 : vector<22x16xf32>
    %c14 = arith.constant 14 : index
    %c0_73 = arith.constant 0 : index
    %82 = vector.load %arg17[%c14, %c0_73] : memref<36x512xf32, #tpu.memory_space<vmem>>, vector<22x32xf32>
    %c0_74 = arith.constant 0 : index
    %c0_75 = arith.constant 0 : index
    %83 = vector.load %arg14[%c0_74, %c0_75] : memref<32x16xf32, #tpu.memory_space<vmem>>, vector<32x16xf32>
    %cst_76 = arith.constant dense<0.000000e+00> : vector<22x16xf32>
    %84 = tpu.matmul %82, %83, %cst_76 {dimension_numbers = #tpu.dot_dimension_numbers<[1], [0], [0], [1], [0, 0, 1, 1], [], []>} : vector<22x32xf32>, vector<32x16xf32>, vector<22x16xf32> -> vector<22x16xf32>
    %85 = arith.addf %81, %84 : vector<22x16xf32>
    %c0_77 = arith.constant 0 : index
    %c0_78 = arith.constant 0 : index
    %86 = vector.load %arg15[%c0_77, %c0_78] : memref<1x16xf32, #tpu.memory_space<vmem>>, vector<1x16xf32>
    %87 = vector.broadcast %86 : vector<1x16xf32> to vector<22x16xf32>
    %88 = arith.addf %85, %87 : vector<22x16xf32>
    %c0_79 = arith.constant 0 : index
    %c0_80 = arith.constant 0 : index
    %c0_81 = arith.constant 0 : index
    %89 = vector.load %arg16[%c0_79, %c0_80, %c0_81] : memref<1x22x16xf32, #tpu.memory_space<vmem>>, vector<1x22x16xf32>
    %90 = vector.shape_cast %89 : vector<1x22x16xf32> to vector<22x16xf32>
    %91 = vector.shape_cast %88 : vector<22x16xf32> to vector<1x22x16xf32>
    tpu.vector_store %arg16[%c0_79, %c0_80, %c0_81], %91 {strides = array<i32>} : memref<1x22x16xf32, #tpu.memory_space<vmem>>, vector<1x22x16xf32>,
    return
  }
  func.func @transform_0(%arg0: i32) -> (i32, i32, i32) {
    %c0_i32 = arith.constant 0 : i32
    %c0_i32_0 = arith.constant 0 : i32
    %c0_i32_1 = arith.constant 0 : i32
    return %arg0, %c0_i32, %c0_i32_0 : i32, i32, i32
  }
  func.func @transform_1(%arg0: i32) -> (i32, i32) {
    %c0_i32 = arith.constant 0 : i32
    %c0_i32_0 = arith.constant 0 : i32
    %c0_i32_1 = arith.constant 0 : i32
    return %c0_i32, %c0_i32_0 : i32, i32
  }
  func.func @transform_2(%arg0: i32) -> (i32, i32) {
    %c0_i32 = arith.constant 0 : i32
    %c0_i32_0 = arith.constant 0 : i32
    %c0_i32_1 = arith.constant 0 : i32
    return %c0_i32, %c0_i32_0 : i32, i32
  }
  func.func @transform_3(%arg0: i32) -> (i32, i32) {
    %c0_i32 = arith.constant 0 : i32
    %c0_i32_0 = arith.constant 0 : i32
    %c0_i32_1 = arith.constant 0 : i32
    return %c0_i32, %c0_i32_0 : i32, i32
  }
  func.func @transform_4(%arg0: i32) -> (i32, i32) {
    %c0_i32 = arith.constant 0 : i32
    %c0_i32_0 = arith.constant 0 : i32
    %c0_i32_1 = arith.constant 0 : i32
    return %c0_i32, %c0_i32_0 : i32, i32
  }
  func.func @transform_5(%arg0: i32) -> (i32, i32) {
    %c0_i32 = arith.constant 0 : i32
    %c0_i32_0 = arith.constant 0 : i32
    %c0_i32_1 = arith.constant 0 : i32
    return %c0_i32, %c0_i32_0 : i32, i32
  }
  func.func @transform_6(%arg0: i32) -> (i32, i32) {
    %c0_i32 = arith.constant 0 : i32
    %c0_i32_0 = arith.constant 0 : i32
    %c0_i32_1 = arith.constant 0 : i32
    return %c0_i32, %c0_i32_0 : i32, i32
  }
  func.func @transform_7(%arg0: i32) -> (i32, i32) {
    %c0_i32 = arith.constant 0 : i32
    %c0_i32_0 = arith.constant 0 : i32
    %c0_i32_1 = arith.constant 0 : i32
    return %c0_i32, %c0_i32_0 : i32, i32
  }
  func.func @transform_8(%arg0: i32) -> (i32, i32) {
    %c0_i32 = arith.constant 0 : i32
    %c0_i32_0 = arith.constant 0 : i32
    %c0_i32_1 = arith.constant 0 : i32
    return %c0_i32, %c0_i32_0 : i32, i32
  }
  func.func @transform_9(%arg0: i32) -> (i32, i32) {
    %c0_i32 = arith.constant 0 : i32
    %c0_i32_0 = arith.constant 0 : i32
    %c0_i32_1 = arith.constant 0 : i32
    return %c0_i32, %c0_i32_0 : i32, i32
  }
  func.func @transform_10(%arg0: i32) -> (i32, i32) {
    %c0_i32 = arith.constant 0 : i32
    %c0_i32_0 = arith.constant 0 : i32
    %c0_i32_1 = arith.constant 0 : i32
    return %c0_i32, %c0_i32_0 : i32, i32
  }
  func.func @transform_11(%arg0: i32) -> (i32, i32) {
    %c0_i32 = arith.constant 0 : i32
    %c0_i32_0 = arith.constant 0 : i32
    %c0_i32_1 = arith.constant 0 : i32
    return %c0_i32, %c0_i32_0 : i32, i32
  }
  func.func @transform_12(%arg0: i32) -> (i32, i32) {
    %c0_i32 = arith.constant 0 : i32
    %c0_i32_0 = arith.constant 0 : i32
    %c0_i32_1 = arith.constant 0 : i32
    return %c0_i32, %c0_i32_0 : i32, i32
  }
  func.func @transform_13(%arg0: i32) -> (i32, i32) {
    %c0_i32 = arith.constant 0 : i32
    %c0_i32_0 = arith.constant 0 : i32
    %c0_i32_1 = arith.constant 0 : i32
    return %c0_i32, %c0_i32_0 : i32, i32
  }
  func.func @transform_14(%arg0: i32) -> (i32, i32) {
    %c0_i32 = arith.constant 0 : i32
    %c0_i32_0 = arith.constant 0 : i32
    %c0_i32_1 = arith.constant 0 : i32
    return %c0_i32, %c0_i32_0 : i32, i32
  }
  func.func @transform_15(%arg0: i32) -> (i32, i32, i32) {
    %c0_i32 = arith.constant 0 : i32
    %c0_i32_0 = arith.constant 0 : i32
    %c0_i32_1 = arith.constant 0 : i32
    return %arg0, %c0_i32, %c0_i32_0 : i32, i32, i32
  }
}

</mosaic_0001>

<llo_original>
// kernel: grid_decoder_forward.1
$region0: #{grid_decoder_forward.1}
  #allocation0 [shape = 'u32[]', space=smem, size = 0x4, offset = 0x4, fixed_abs, tag = 'smem constant byte address 0x4 - core index']
  #allocation1 [shape = 'u32[72,128]{1,0:T(1,128)}', space=vmem, size = 0x9000, scoped, tag = 'internal scratch']
  #allocation2 [shape = 'f32[36,512]{1,0:T(8,128)}', space=vmem, size = 0x14000, scoped, tag = 'scratch operand']
  %s0 = inlined_call_operand.vmem [shape: f32[2,16,128], index: 0, kind: input, shape index: {}]
  %s1 = inlined_call_operand.vmem [shape: f32[128,256], index: 1, kind: input, shape index: {}]
  %s2 = inlined_call_operand.vmem [shape: f32[1,256], index: 2, kind: input, shape index: {}]
  %s3 = inlined_call_operand.vmem [shape: f32[128,256], index: 3, kind: input, shape index: {}]
  %s4 = inlined_call_operand.vmem [shape: f32[1,256], index: 4, kind: input, shape index: {}]
  %s5 = inlined_call_operand.vmem [shape: f32[32,16], index: 5, kind: input, shape index: {}]
  %s6 = inlined_call_operand.vmem [shape: f32[128,16], index: 6, kind: input, shape index: {}]
  %s7 = inlined_call_operand.vmem [shape: f32[32,16], index: 7, kind: input, shape index: {}]
  %s8 = inlined_call_operand.vmem [shape: f32[512,16], index: 8, kind: input, shape index: {}]
  %s9 = inlined_call_operand.vmem [shape: f32[512,16], index: 9, kind: input, shape index: {}]
  %s10 = inlined_call_operand.vmem [shape: f32[512,16], index: 10, kind: input, shape index: {}]
  %s11 = inlined_call_operand.vmem [shape: f32[32,16], index: 11, kind: input, shape index: {}]
  %s12 = inlined_call_operand.vmem [shape: f32[128,16], index: 12, kind: input, shape index: {}]
  %s13 = inlined_call_operand.vmem [shape: f32[32,16], index: 13, kind: input, shape index: {}]
  %s14 = inlined_call_operand.vmem [shape: f32[1,16], index: 14, kind: input, shape index: {}]
  %s15 = inlined_call_operand.vmem [shape: f32[2,22,16], index: 15, kind: output, shape index: {}]
  %s16 = sld [smem:[#allocation0]]
  $region93: #{grid_decoder_forward.1} parent=0
    _
  %s18 = ssub.s32 1, %s16
  %s19 = scalar_select 0, %s18, %s16
  loop: start=0, step=1, limit=4
  $region2: #{grid_decoder_forward.1} parent=0 // loop_pre_header
    _
  $region3: #{grid_decoder_forward.1} parent=0 // loop_header
    %s21 = sphi 0, %s25
    %p22 = scmp.ge.s32.totalorder %s21, 4
    %s31 = sphi 0, %s33
    %s34 = sphi 0, %s31
    %s35 = sphi 0, %s34
    %s51 = sphi 0, %s35
    %s55 = sphi 0, %s55
    %s57 = sphi 0, %s55
    %s58 = sphi 0, %s57
    %s72 = sphi 0, %s58
    %s76 = sphi 0, %s76
    %s78 = sphi 0, %s76
    %s79 = sphi 0, %s78
    %s93 = sphi 0, %s79
    %s97 = sphi 0, %s97
    %s99 = sphi 0, %s97
    %s100 = sphi 0, %s99
    %s114 = sphi 0, %s100
    %s118 = sphi 0, %s118
    %s120 = sphi 0, %s118
    %s121 = sphi 0, %s120
    %s135 = sphi 0, %s121
    %s139 = sphi 0, %s139
    %s141 = sphi 0, %s139
    %s142 = sphi 0, %s141
    %s156 = sphi 0, %s142
    %s160 = sphi 0, %s160
    %s162 = sphi 0, %s160
    %s163 = sphi 0, %s162
    %s177 = sphi 0, %s163
    %s181 = sphi 0, %s181
    %s183 = sphi 0, %s181
    %s184 = sphi 0, %s183
    %s198 = sphi 0, %s184
    %s202 = sphi 0, %s202
    %s204 = sphi 0, %s202
    %s205 = sphi 0, %s204
    %s219 = sphi 0, %s205
    %s223 = sphi 0, %s223
    %s225 = sphi 0, %s223
    %s226 = sphi 0, %s225
    %s240 = sphi 0, %s226
    %s244 = sphi 0, %s244
    %s246 = sphi 0, %s244
    %s247 = sphi 0, %s246
    %s261 = sphi 0, %s247
    %s265 = sphi 0, %s265
    %s267 = sphi 0, %s265
    %s268 = sphi 0, %s267
    %s282 = sphi 0, %s268
    %s286 = sphi 0, %s286
    %s288 = sphi 0, %s286
    %s289 = sphi 0, %s288
    %s303 = sphi 0, %s289
    %s307 = sphi 0, %s307
    %s309 = sphi 0, %s307
    %s310 = sphi 0, %s309
    %s324 = sphi 0, %s310
    %s328 = sphi 0, %s328
    %s330 = sphi 0, %s328
    %s331 = sphi 0, %s330
    %s345 = sphi 0, %s331
    %s351 = sphi 0, %s353
    %s354 = sphi 0, %s351
    %s355 = sphi 0, %s354
    %s371 = sphi 0, %s355
  $region4: #{grid_decoder_forward.1} parent=0 // loop_header_branch
    %24 = sbr.rel (%p22) target = $region8
  $region5: #{grid_decoder_forward.1} parent=0 // loop_body
    %s26 = ssub.s32 %s21, 1
    %s27 = ssub.s32 %s21, 2
    %s28 = sadd.s32 %s21, 1
    %s29 = ssub.s32 %s21, %s28
    %p30 = scmp.eq.s32.totalorder %s29, 0
    %s32 = sadd.s32 %s31, 1
    %s33 = scalar_select %p30, %s31, %s32
    %p36 = pneg %p30
    %p37 = scmp.eq.s32.totalorder %s21, 1
    %p38 = por %p36, %p37
    %p39 = scmp.ne.s32.totalorder %s31, %s34
    %p40 = scmp.eq.s32.totalorder %s21, 0
    %p41 = por %p39, %p40
    %p42 = scmp.ne.s32.totalorder %s31, %s34
    %p43 = scmp.eq.s32.totalorder %s26, 1
    %p44 = por %p42, %p43
    %p45 = scmp.ne.s32.totalorder %s34, %s35
    %p46 = scmp.eq.s32.totalorder %s26, 0
    %p47 = por %p45, %p46
    %p48 = scmp.ne.s32.totalorder %s34, %s35
    %p49 = scmp.eq.s32.totalorder %s27, 1
    %p50 = por %p48, %p49
    %p52 = scmp.ne.s32.totalorder %s35, %s51
    %p53 = scmp.eq.s32.totalorder %s27, 0
    %p54 = por %p52, %p53
    %s56 = sadd.s32 %s55, 1
    %p59 = scmp.eq.s32.totalorder %s21, 1
    %p60 = scmp.ne.s32.totalorder %s55, %s57
    %p61 = scmp.eq.s32.totalorder %s21, 0
    %p62 = por %p60, %p61
    %p63 = scmp.ne.s32.totalorder %s55, %s57
    %p64 = scmp.eq.s32.totalorder %s26, 1
    %p65 = por %p63, %p64
    %p66 = scmp.ne.s32.totalorder %s57, %s58
    %p67 = scmp.eq.s32.totalorder %s26, 0
    %p68 = por %p66, %p67
    %p69 = scmp.ne.s32.totalorder %s57, %s58
    %p70 = scmp.eq.s32.totalorder %s27, 1
    %p71 = por %p69, %p70
    %p73 = scmp.ne.s32.totalorder %s58, %s72
    %p74 = scmp.eq.s32.totalorder %s27, 0
    %p75 = por %p73, %p74
    %s77 = sadd.s32 %s76, 1
    %p80 = scmp.eq.s32.totalorder %s21, 1
    %p81 = scmp.ne.s32.totalorder %s76, %s78
    %p82 = scmp.eq.s32.totalorder %s21, 0
    %p83 = por %p81, %p82
    %p84 = scmp.ne.s32.totalorder %s76, %s78
    %p85 = scmp.eq.s32.totalorder %s26, 1
    %p86 = por %p84, %p85
    %p87 = scmp.ne.s32.totalorder %s78, %s79
    %p88 = scmp.eq.s32.totalorder %s26, 0
    %p89 = por %p87, %p88
    %p90 = scmp.ne.s32.totalorder %s78, %s79
    %p91 = scmp.eq.s32.totalorder %s27, 1
    %p92 = por %p90, %p91
    %p94 = scmp.ne.s32.totalorder %s79, %s93
    %p95 = scmp.eq.s32.totalorder %s27, 0
    %p96 = por %p94, %p95
    %s98 = sadd.s32 %s97, 1
    %p101 = scmp.eq.s32.totalorder %s21, 1
    %p102 = scmp.ne.s32.totalorder %s97, %s99
    %p103 = scmp.eq.s32.totalorder %s21, 0
    %p104 = por %p102, %p103
    %p105 = scmp.ne.s32.totalorder %s97, %s99
    %p106 = scmp.eq.s32.totalorder %s26, 1
    %p107 = por %p105, %p106
    %p108 = scmp.ne.s32.totalorder %s99, %s100
    %p109 = scmp.eq.s32.totalorder %s26, 0
    %p110 = por %p108, %p109
    %p111 = scmp.ne.s32.totalorder %s99, %s100
    %p112 = scmp.eq.s32.totalorder %s27, 1
    %p113 = por %p111, %p112
    %p115 = scmp.ne.s32.totalorder %s100, %s114
    %p116 = scmp.eq.s32.totalorder %s27, 0
    %p117 = por %p115, %p116
    %s119 = sadd.s32 %s118, 1
    %p122 = scmp.eq.s32.totalorder %s21, 1
    %p123 = scmp.ne.s32.totalorder %s118, %s120
    %p124 = scmp.eq.s32.totalorder %s21, 0
    %p125 = por %p123, %p124
    %p126 = scmp.ne.s32.totalorder %s118, %s120
    %p127 = scmp.eq.s32.totalorder %s26, 1
    %p128 = por %p126, %p127
    %p129 = scmp.ne.s32.totalorder %s120, %s121
    %p130 = scmp.eq.s32.totalorder %s26, 0
    %p131 = por %p129, %p130
    %p132 = scmp.ne.s32.totalorder %s120, %s121
    %p133 = scmp.eq.s32.totalorder %s27, 1
    %p134 = por %p132, %p133
    %p136 = scmp.ne.s32.totalorder %s121, %s135
    %p137 = scmp.eq.s32.totalorder %s27, 0
    %p138 = por %p136, %p137
    %s140 = sadd.s32 %s139, 1
    %p143 = scmp.eq.s32.totalorder %s21, 1
    %p144 = scmp.ne.s32.totalorder %s139, %s141
    %p145 = scmp.eq.s32.totalorder %s21, 0
    %p146 = por %p144, %p145
    %p147 = scmp.ne.s32.totalorder %s139, %s141
    %p148 = scmp.eq.s32.totalorder %s26, 1
    %p149 = por %p147, %p148
    %p150 = scmp.ne.s32.totalorder %s141, %s142
    %p151 = scmp.eq.s32.totalorder %s26, 0
    %p152 = por %p150, %p151
    %p153 = scmp.ne.s32.totalorder %s141, %s142
    %p154 = scmp.eq.s32.totalorder %s27, 1
    %p155 = por %p153, %p154
    %p157 = scmp.ne.s32.totalorder %s142, %s156
    %p158 = scmp.eq.s32.totalorder %s27, 0
    %p159 = por %p157, %p158
    %s161 = sadd.s32 %s160, 1
    %p164 = scmp.eq.s32.totalorder %s21, 1
    %p165 = scmp.ne.s32.totalorder %s160, %s162
    %p166 = scmp.eq.s32.totalorder %s21, 0
    %p167 = por %p165, %p166
    %p168 = scmp.ne.s32.totalorder %s160, %s162
    %p169 = scmp.eq.s32.totalorder %s26, 1
    %p170 = por %p168, %p169
    %p171 = scmp.ne.s32.totalorder %s162, %s163
    %p172 = scmp.eq.s32.totalorder %s26, 0
    %p173 = por %p171, %p172
    %p174 = scmp.ne.s32.totalorder %s162, %s163
    %p175 = scmp.eq.s32.totalorder %s27, 1
    %p176 = por %p174, %p175
    %p178 = scmp.ne.s32.totalorder %s163, %s177
    %p179 = scmp.eq.s32.totalorder %s27, 0
    %p180 = por %p178, %p179
    %s182 = sadd.s32 %s181, 1
    %p185 = scmp.eq.s32.totalorder %s21, 1
    %p186 = scmp.ne.s32.totalorder %s181, %s183
    %p187 = scmp.eq.s32.totalorder %s21, 0
    %p188 = por %p186, %p187
    %p189 = scmp.ne.s32.totalorder %s181, %s183
    %p190 = scmp.eq.s32.totalorder %s26, 1
    %p191 = por %p189, %p190
    %p192 = scmp.ne.s32.totalorder %s183, %s184
    %p193 = scmp.eq.s32.totalorder %s26, 0
    %p194 = por %p192, %p193
    %p195 = scmp.ne.s32.totalorder %s183, %s184
    %p196 = scmp.eq.s32.totalorder %s27, 1
    %p197 = por %p195, %p196
    %p199 = scmp.ne.s32.totalorder %s184, %s198
    %p200 = scmp.eq.s32.totalorder %s27, 0
    %p201 = por %p199, %p200
    %s203 = sadd.s32 %s202, 1
    %p206 = scmp.eq.s32.totalorder %s21, 1
    %p207 = scmp.ne.s32.totalorder %s202, %s204
    %p208 = scmp.eq.s32.totalorder %s21, 0
    %p209 = por %p207, %p208
    %p210 = scmp.ne.s32.totalorder %s202, %s204
    %p211 = scmp.eq.s32.totalorder %s26, 1
    %p212 = por %p210, %p211
    %p213 = scmp.ne.s32.totalorder %s204, %s205
    %p214 = scmp.eq.s32.totalorder %s26, 0
    %p215 = por %p213, %p214
    %p216 = scmp.ne.s32.totalorder %s204, %s205
    %p217 = scmp.eq.s32.totalorder %s27, 1
    %p218 = por %p216, %p217
    %p220 = scmp.ne.s32.totalorder %s205, %s219
    %p221 = scmp.eq.s32.totalorder %s27, 0
    %p222 = por %p220, %p221
    %s224 = sadd.s32 %s223, 1
    %p227 = scmp.eq.s32.totalorder %s21, 1
    %p228 = scmp.ne.s32.totalorder %s223, %s225
    %p229 = scmp.eq.s32.totalorder %s21, 0
    %p230 = por %p228, %p229
    %p231 = scmp.ne.s32.totalorder %s223, %s225
    %p232 = scmp.eq.s32.totalorder %s26, 1
    %p233 = por %p231, %p232
    %p234 = scmp.ne.s32.totalorder %s225, %s226
    %p235 = scmp.eq.s32.totalorder %s26, 0
    %p236 = por %p234, %p235
    %p237 = scmp.ne.s32.totalorder %s225, %s226
    %p238 = scmp.eq.s32.totalorder %s27, 1
    %p239 = por %p237, %p238
    %p241 = scmp.ne.s32.totalorder %s226, %s240
    %p242 = scmp.eq.s32.totalorder %s27, 0
    %p243 = por %p241, %p242
    %s245 = sadd.s32 %s244, 1
    %p248 = scmp.eq.s32.totalorder %s21, 1
    %p249 = scmp.ne.s32.totalorder %s244, %s246
    %p250 = scmp.eq.s32.totalorder %s21, 0
    %p251 = por %p249, %p250
    %p252 = scmp.ne.s32.totalorder %s244, %s246
    %p253 = scmp.eq.s32.totalorder %s26, 1
    %p254 = por %p252, %p253
    %p255 = scmp.ne.s32.totalorder %s246, %s247
    %p256 = scmp.eq.s32.totalorder %s26, 0
    %p257 = por %p255, %p256
    %p258 = scmp.ne.s32.totalorder %s246, %s247
    %p259 = scmp.eq.s32.totalorder %s27, 1
    %p260 = por %p258, %p259
    %p262 = scmp.ne.s32.totalorder %s247, %s261
    %p263 = scmp.eq.s32.totalorder %s27, 0
    %p264 = por %p262, %p263
    %s266 = sadd.s32 %s265, 1
    %p269 = scmp.eq.s32.totalorder %s21, 1
    %p270 = scmp.ne.s32.totalorder %s265, %s267
    %p271 = scmp.eq.s32.totalorder %s21, 0
    %p272 = por %p270, %p271
    %p273 = scmp.ne.s32.totalorder %s265, %s267
    %p274 = scmp.eq.s32.totalorder %s26, 1
    %p275 = por %p273, %p274
    %p276 = scmp.ne.s32.totalorder %s267, %s268
    %p277 = scmp.eq.s32.totalorder %s26, 0
    %p278 = por %p276, %p277
    %p279 = scmp.ne.s32.totalorder %s267, %s268
    %p280 = scmp.eq.s32.totalorder %s27, 1
    %p281 = por %p279, %p280
    %p283 = scmp.ne.s32.totalorder %s268, %s282
    %p284 = scmp.eq.s32.totalorder %s27, 0
    %p285 = por %p283, %p284
    %s287 = sadd.s32 %s286, 1
    %p290 = scmp.eq.s32.totalorder %s21, 1
    %p291 = scmp.ne.s32.totalorder %s286, %s288
    %p292 = scmp.eq.s32.totalorder %s21, 0
    %p293 = por %p291, %p292
    %p294 = scmp.ne.s32.totalorder %s286, %s288
    %p295 = scmp.eq.s32.totalorder %s26, 1
    %p296 = por %p294, %p295
    %p297 = scmp.ne.s32.totalorder %s288, %s289
    %p298 = scmp.eq.s32.totalorder %s26, 0
    %p299 = por %p297, %p298
    %p300 = scmp.ne.s32.totalorder %s288, %s289
    %p301 = scmp.eq.s32.totalorder %s27, 1
    %p302 = por %p300, %p301
    %p304 = scmp.ne.s32.totalorder %s289, %s303
    %p305 = scmp.eq.s32.totalorder %s27, 0
    %p306 = por %p304, %p305
    %s308 = sadd.s32 %s307, 1
    %p311 = scmp.eq.s32.totalorder %s21, 1
    %p312 = scmp.ne.s32.totalorder %s307, %s309
    %p313 = scmp.eq.s32.totalorder %s21, 0
    %p314 = por %p312, %p313
    %p315 = scmp.ne.s32.totalorder %s307, %s309
    %p316 = scmp.eq.s32.totalorder %s26, 1
    %p317 = por %p315, %p316
    %p318 = scmp.ne.s32.totalorder %s309, %s310
    %p319 = scmp.eq.s32.totalorder %s26, 0
    %p320 = por %p318, %p319
    %p321 = scmp.ne.s32.totalorder %s309, %s310
    %p322 = scmp.eq.s32.totalorder %s27, 1
    %p323 = por %p321, %p322
    %p325 = scmp.ne.s32.totalorder %s310, %s324
    %p326 = scmp.eq.s32.totalorder %s27, 0
    %p327 = por %p325, %p326
    %s329 = sadd.s32 %s328, 1
    %p332 = scmp.eq.s32.totalorder %s21, 1
    %p333 = scmp.ne.s32.totalorder %s328, %s330
    %p334 = scmp.eq.s32.totalorder %s21, 0
    %p335 = por %p333, %p334
    %p336 = scmp.ne.s32.totalorder %s328, %s330
    %p337 = scmp.eq.s32.totalorder %s26, 1
    %p338 = por %p336, %p337
    %p339 = scmp.ne.s32.totalorder %s330, %s331
    %p340 = scmp.eq.s32.totalorder %s26, 0
    %p341 = por %p339, %p340
    %p342 = scmp.ne.s32.totalorder %s330, %s331
    %p343 = scmp.eq.s32.totalorder %s27, 1
    %p344 = por %p342, %p343
    %p346 = scmp.ne.s32.totalorder %s331, %s345
    %p347 = scmp.eq.s32.totalorder %s27, 0
    %p348 = por %p346, %p347
    %s349 = ssub.s32 %s21, %s28
    %p350 = scmp.eq.s32.totalorder %s349, 0
    %s352 = sadd.s32 %s351, 1
    %s353 = scalar_select %p350, %s351, %s352
    %p356 = pneg %p350
    %p357 = scmp.eq.s32.totalorder %s21, 1
    %p358 = por %p356, %p357
    %p359 = scmp.ne.s32.totalorder %s351, %s354
    %p360 = scmp.eq.s32.totalorder %s21, 0
    %p361 = por %p359, %p360
    %p362 = scmp.ne.s32.totalorder %s351, %s354
    %p363 = scmp.eq.s32.totalorder %s26, 1
    %p364 = por %p362, %p363
    %p365 = scmp.ne.s32.totalorder %s354, %s355
    %p366 = scmp.eq.s32.totalorder %s26, 0
    %p367 = por %p365, %p366
    %p368 = scmp.ne.s32.totalorder %s354, %s355
    %p369 = scmp.eq.s32.totalorder %s27, 1
    %p370 = por %p368, %p369
    %p372 = scmp.ne.s32.totalorder %s355, %s371
    %p373 = scmp.eq.s32.totalorder %s27, 0
    %p374 = por %p372, %p373
    %p375 = scmp.le.s32.totalorder 1, %s21
    %p376 = scmp.lt.s32.totalorder %s21, 3
    %p377 = pnand %p375, %p376
    %p378 = pneg %p377
    // Predicated region
    $region9: #{grid_decoder_forward.1} parent=5 // pred_check
      _
    $region10: #{grid_decoder_forward.1} parent=5 // pred_check_branch
      %380 = sbr.rel (%p377) target = $region12
    $region11: #{grid_decoder_forward.1} parent=5 // pred_region
      %s381 = ssub.s32 %s21, 1
      // Predicated region
      $region13: #{grid_decoder_forward.1} parent=11 // pred_check
        %p382 = pneg %p68
      $region14: #{grid_decoder_forward.1} parent=11 // pred_check_branch
        %384 = sbr.rel (%p382) target = $region16
      $region15: #{grid_decoder_forward.1} parent=11 // pred_region
        _
      $region16: #{grid_decoder_forward.1} parent=11 // pred_fallthru
        _
      // Predicated region
      $region17: #{grid_decoder_forward.1} parent=11 // pred_check
        %p385 = pneg %p89
      $region18: #{grid_decoder_forward.1} parent=11 // pred_check_branch
        %387 = sbr.rel (%p385) target = $region20
      $region19: #{grid_decoder_forward.1} parent=11 // pred_region
        _
      $region20: #{grid_decoder_forward.1} parent=11 // pred_fallthru
        _
      // Predicated region
      $region21: #{grid_decoder_forward.1} parent=11 // pred_check
        %p388 = pneg %p110
      $region22: #{grid_decoder_forward.1} parent=11 // pred_check_branch
        %390 = sbr.rel (%p388) target = $region24
      $region23: #{grid_decoder_forward.1} parent=11 // pred_region
        _
      $region24: #{grid_decoder_forward.1} parent=11 // pred_fallthru
        _
      // Predicated region
      $region25: #{grid_decoder_forward.1} parent=11 // pred_check
        %p391 = pneg %p131
      $region26: #{grid_decoder_forward.1} parent=11 // pred_check_branch
        %393 = sbr.rel (%p391) target = $region28
      $region27: #{grid_decoder_forward.1} parent=11 // pred_region
        _
      $region28: #{grid_decoder_forward.1} parent=11 // pred_fallthru
        _
      // Predicated region
      $region29: #{grid_decoder_forward.1} parent=11 // pred_check
        %p394 = pneg %p152
      $region30: #{grid_decoder_forward.1} parent=11 // pred_check_branch
        %396 = sbr.rel (%p394) target = $region32
      $region31: #{grid_decoder_forward.1} parent=11 // pred_region
        _
      $region32: #{grid_decoder_forward.1} parent=11 // pred_fallthru
        _
      // Predicated region
      $region33: #{grid_decoder_forward.1} parent=11 // pred_check
        %p397 = pneg %p173
      $region34: #{grid_decoder_forward.1} parent=11 // pred_check_branch
        %399 = sbr.rel (%p397) target = $region36
      $region35: #{grid_decoder_forward.1} parent=11 // pred_region
        _
      $region36: #{grid_decoder_forward.1} parent=11 // pred_fallthru
        _
      // Predicated region
      $region37: #{grid_decoder_forward.1} parent=11 // pred_check
        %p400 = pneg %p194
      $region38: #{grid_decoder_forward.1} parent=11 // pred_check_branch
        %402 = sbr.rel (%p400) target = $region40
      $region39: #{grid_decoder_forward.1} parent=11 // pred_region
        _
      $region40: #{grid_decoder_forward.1} parent=11 // pred_fallthru
        _
      // Predicated region
      $region41: #{grid_decoder_forward.1} parent=11 // pred_check
        %p403 = pneg %p215
      $region42: #{grid_decoder_forward.1} parent=11 // pred_check_branch
        %405 = sbr.rel (%p403) target = $region44
      $region43: #{grid_decoder_forward.1} parent=11 // pred_region
        _
      $region44: #{grid_decoder_forward.1} parent=11 // pred_fallthru
        _
      // Predicated region
      $region45: #{grid_decoder_forward.1} parent=11 // pred_check
        %p406 = pneg %p236
      $region46: #{grid_decoder_forward.1} parent=11 // pred_check_branch
        %408 = sbr.rel (%p406) target = $region48
      $region47: #{grid_decoder_forward.1} parent=11 // pred_region
        _
      $region48: #{grid_decoder_forward.1} parent=11 // pred_fallthru
        _
      // Predicated region
      $region49: #{grid_decoder_forward.1} parent=11 // pred_check
        %p409 = pneg %p257
      $region50: #{grid_decoder_forward.1} parent=11 // pred_check_branch
        %411 = sbr.rel (%p409) target = $region52
      $region51: #{grid_decoder_forward.1} parent=11 // pred_region
        _
      $region52: #{grid_decoder_forward.1} parent=11 // pred_fallthru
        _
      // Predicated region
      $region53: #{grid_decoder_forward.1} parent=11 // pred_check
        %p412 = pneg %p278
      $region54: #{grid_decoder_forward.1} parent=11 // pred_check_branch
        %414 = sbr.rel (%p412) target = $region56
      $region55: #{grid_decoder_forward.1} parent=11 // pred_region
        _
      $region56: #{grid_decoder_forward.1} parent=11 // pred_fallthru
        _
      // Predicated region
      $region57: #{grid_decoder_forward.1} parent=11 // pred_check
        %p415 = pneg %p299
      $region58: #{grid_decoder_forward.1} parent=11 // pred_check_branch
        %417 = sbr.rel (%p415) target = $region60
      $region59: #{grid_decoder_forward.1} parent=11 // pred_region
        _
      $region60: #{grid_decoder_forward.1} parent=11 // pred_fallthru
        _
      // Predicated region
      $region61: #{grid_decoder_forward.1} parent=11 // pred_check
        %p418 = pneg %p320
      $region62: #{grid_decoder_forward.1} parent=11 // pred_check_branch
        %420 = sbr.rel (%p418) target = $region64
      $region63: #{grid_decoder_forward.1} parent=11 // pred_region
        _
      $region64: #{grid_decoder_forward.1} parent=11 // pred_fallthru
        _
      // Predicated region
      $region65: #{grid_decoder_forward.1} parent=11 // pred_check
        %p421 = pneg %p341
      $region66: #{grid_decoder_forward.1} parent=11 // pred_check_branch
        %423 = sbr.rel (%p421) target = $region68
      $region67: #{grid_decoder_forward.1} parent=11 // pred_region
        _
      $region68: #{grid_decoder_forward.1} parent=11 // pred_fallthru
        _
    $region12: #{grid_decoder_forward.1} parent=5 // pred_fallthru
      _
    %p424 = scmp.lt.s32.totalorder %s21, 2
    // Predicated region
    $region69: #{grid_decoder_forward.1} parent=5 // pred_check
      %p425 = pneg %p424
    $region70: #{grid_decoder_forward.1} parent=5 // pred_check_branch
      %427 = sbr.rel (%p425) target = $region72
    $region71: #{grid_decoder_forward.1} parent=5 // pred_region
      // Predicated region
      $region73: #{grid_decoder_forward.1} parent=71 // pred_check
        %p428 = pneg %p41
      $region74: #{grid_decoder_forward.1} parent=71 // pred_check_branch
        %430 = sbr.rel (%p428) target = $region76
      $region75: #{grid_decoder_forward.1} parent=71 // pred_region
        %p431 = scmp.lt.s32.totalorder %s21, 1
        %s432 = scalar_select %p431, %s21, 1
        %s433 = smul.addr %s432, 2
        %s434 = smul.addr %s433, 8
        %s435 = scalar_lea.vmem %s0, %s434
      $region76: #{grid_decoder_forward.1} parent=71 // pred_fallthru
        _
    $region72: #{grid_decoder_forward.1} parent=5 // pred_fallthru
      _
    %p436 = scmp.le.s32.totalorder 1, %s21
    %p437 = scmp.lt.s32.totalorder %s21, 3
    %p438 = pnand %p436, %p437
    %p439 = pneg %p438
    // Predicated region
    $region77: #{grid_decoder_forward.1} parent=5 // pred_check
      _
    $region78: #{grid_decoder_forward.1} parent=5 // pred_check_branch
      %441 = sbr.rel (%p438) target = $region80
    $region79: #{grid_decoder_forward.1} parent=5 // pred_region
      %s442 = ssub.s32 %s21, 1
      %p443 = scmp.lt.s32.totalorder %s26, 1
      %s444 = scalar_select %p443, %s26, 1
      %s445 = smul.addr %s444, 2
      %s446 = smul.addr %s445, 8
      %s447 = scalar_lea.vmem %s0, %s446
      %p448 = pneg %p47
      %p449 = pneg %p44
      %p450 = pneg %p68
      %p451 = pneg %p65
      %p452 = pneg %p89
      %p453 = pneg %p86
      %p454 = pneg %p110
      %p455 = pneg %p107
      %p456 = pneg %p131
      %p457 = pneg %p128
      %p458 = pneg %p152
      %p459 = pneg %p149
      %p460 = pneg %p173
      %p461 = pneg %p170
      %p462 = pneg %p194
      %p463 = pneg %p191
      %p464 = pneg %p215
      %p465 = pneg %p212
      %p466 = pneg %p236
      %p467 = pneg %p233
      %p468 = pneg %p257
      %p469 = pneg %p254
      %p470 = pneg %p278
      %p471 = pneg %p275
      %p472 = pneg %p299
      %p473 = pneg %p296
      %p474 = pneg %p320
      %p475 = pneg %p317
      %p476 = pneg %p341
      %p477 = pneg %p338
      %p478 = pneg %p367
      %p479 = pneg %p364
      %p480 = scmp.lt.s32.totalorder %s26, 1
      %s481 = scalar_select %p480, %s26, 1
      %s482 = smul.addr %s481, 3
      %s483 = smul.addr %s482, 8
      %s484 = scalar_lea.vmem %s15, %s483
      %p485 = scmp.lt.s32.totalorder %s26, 1
      %s486 = scalar_select %p485, %s26, 1
      %s487 = smul.addr %s486, 2
      %s488 = smul.addr %s487, 8
      %s489 = scalar_lea.vmem %s0, %s488
      %p490 = scmp.lt.s32.totalorder %s26, 1
      %s491 = scalar_select %p490, %s26, 1
      %s492 = smul.addr %s491, 3
      %s493 = smul.addr %s492, 8
      %s494 = scalar_lea.vmem %s15, %s493
      %v495 = vld [vmem:[%s489] sm:$0xff]
      %v496 = vld [vmem:[%s489 + $0x8] sm:$0xff]
      %v497 = vld [vmem:[%s1] sm:$0xff]
      %v498 = vld [vmem:[%s1 + $0x8] sm:$0xff]
      %v499 = vld [vmem:[%s1 + $0x10] sm:$0xff]
      %v500 = vld [vmem:[%s1 + $0x18] sm:$0xff]
      %v501 = vld [vmem:[%s1 + $0x20] sm:$0xff]
      %v502 = vld [vmem:[%s1 + $0x28] sm:$0xff]
      %v503 = vld [vmem:[%s1 + $0x30] sm:$0xff]
      %v504 = vld [vmem:[%s1 + $0x38] sm:$0xff]
      %v505 = vld [vmem:[%s1 + $0x40] sm:$0xff]
      %v506 = vld [vmem:[%s1 + $0x48] sm:$0xff]
      %v507 = vld [vmem:[%s1 + $0x50] sm:$0xff]
      %v508 = vld [vmem:[%s1 + $0x58] sm:$0xff]
      %v509 = vld [vmem:[%s1 + $0x60] sm:$0xff]
      %v510 = vld [vmem:[%s1 + $0x68] sm:$0xff]
      %v511 = vld [vmem:[%s1 + $0x70] sm:$0xff]
      %v512 = vld [vmem:[%s1 + $0x78] sm:$0xff]
      %v513 = vld [vmem:[%s1 + $0x80] sm:$0xff]
      %v514 = vld [vmem:[%s1 + $0x88] sm:$0xff]
      %v515 = vld [vmem:[%s1 + $0x90] sm:$0xff]
      %v516 = vld [vmem:[%s1 + $0x98] sm:$0xff]
      %v517 = vld [vmem:[%s1 + $0xa0] sm:$0xff]
      %v518 = vld [vmem:[%s1 + $0xa8] sm:$0xff]
      %v519 = vld [vmem:[%s1 + $0xb0] sm:$0xff]
      %v520 = vld [vmem:[%s1 + $0xb8] sm:$0xff]
      %v521 = vld [vmem:[%s1 + $0xc0] sm:$0xff]
      %v522 = vld [vmem:[%s1 + $0xc8] sm:$0xff]
      %v523 = vld [vmem:[%s1 + $0xd0] sm:$0xff]
      %v524 = vld [vmem:[%s1 + $0xd8] sm:$0xff]
      %v525 = vld [vmem:[%s1 + $0xe0] sm:$0xff]
      %v526 = vld [vmem:[%s1 + $0xe8] sm:$0xff]
      %v527 = vld [vmem:[%s1 + $0xf0] sm:$0xff]
      %v528 = vld [vmem:[%s1 + $0xf8] sm:$0xff]
      %v529 = vld [vmem:[%s2] sm:$0x3]
      %v531 = vperm.slane %v529, 0
      %v532 = vperm.slane %v529, 1
      %535 = vmatpush.msra.mxu0 %v527
      %536 = vmatpush.msra.mxu0 %v525
      %537 = vmatpush.msra.mxu0 %v523
      %538 = vmatpush.msra.mxu0 %v521
      %539 = vmatpush.msra.mxu0 %v519
      %540 = vmatpush.msra.mxu0 %v517
      %541 = vmatpush.msra.mxu0 %v515
      %542 = vmatpush.msra.mxu0 %v513
      %543 = vmatpush.msra.mxu0 %v511
      %544 = vmatpush.msra.mxu0 %v509
      %545 = vmatpush.msra.mxu0 %v507
      %546 = vmatpush.msra.mxu0 %v505
      %547 = vmatpush.msra.mxu0 %v503
      %548 = vmatpush.msra.mxu0 %v501
      %549 = vmatpush.msra.mxu0 %v499
      %550 = vmatpush.msra.mxu0 %v497
      %551 = vmatmul.f32.gmra.mxu0 %v495
      %v552 = vpop.f32.mrf.mxu0
      %v553 = vadd.f32 %v531, %v552
      %554 = vmatmul.f32.gmra.mxu0 %v496
      %v555 = vpop.f32.mrf.mxu0
      %v556 = vadd.f32 %v531, %v555
      %557 = vdwg.mxu0
      %558 = vmatpush.msra.mxu0 %v528
      %559 = vmatpush.msra.mxu0 %v526
      %560 = vmatpush.msra.mxu0 %v524
      %561 = vmatpush.msra.mxu0 %v522
      %562 = vmatpush.msra.mxu0 %v520
      %563 = vmatpush.msra.mxu0 %v518
      %564 = vmatpush.msra.mxu0 %v516
      %565 = vmatpush.msra.mxu0 %v514
      %566 = vmatpush.msra.mxu0 %v512
      %567 = vmatpush.msra.mxu0 %v510
      %568 = vmatpush.msra.mxu0 %v508
      %569 = vmatpush.msra.mxu0 %v506
      %570 = vmatpush.msra.mxu0 %v504
      %571 = vmatpush.msra.mxu0 %v502
      %572 = vmatpush.msra.mxu0 %v500
      %573 = vmatpush.msra.mxu0 %v498
      %574 = vmatmul.f32.gmra.mxu0 %v495
      %v575 = vpop.f32.mrf.mxu0
      %v576 = vadd.f32 %v532, %v575
      %577 = vmatmul.f32.gmra.mxu0 %v496
      %v578 = vpop.f32.mrf.mxu0
      %v579 = vadd.f32 %v532, %v578
      %580 = vdwg.mxu0
      %v581 = vmax.f32 %v553, 0.0
      %v582 = vmax.f32 %v576, 0.0
      %v583 = vmax.f32 %v556, 0.0
      %v584 = vmax.f32 %v579, 0.0
      %585 = vst [vmem:[#allocation2] sm:$0x7f] 0.0
      %586 = vst [vmem:[#allocation2 + $0x8] sm:$0x7f] 0.0
      %587 = vst [vmem:[#allocation2 + $0x10] sm:$0x7f] 0.0
      %588 = vst [vmem:[#allocation2 + $0x18] sm:$0x7f] 0.0
      %589 = vst [vmem:[#allocation2 + $0x20] sm:$0x18] 0.0
      %590 = vst [vmem:[#allocation2 + $0x28] sm:$0x18] 0.0
      %591 = vst [vmem:[#allocation2 + $0x30] sm:$0x18] 0.0
      %592 = vst [vmem:[#allocation2 + $0x38] sm:$0x18] 0.0
      %593 = vst [vmem:[#allocation2 + $0x40] sm:$0x6] 0.0
      %594 = vst [vmem:[#allocation2 + $0x48] sm:$0x6] 0.0
      %595 = vst [vmem:[#allocation2 + $0x50] sm:$0x6] 0.0
      %596 = vst [vmem:[#allocation2 + $0x58] sm:$0x6] 0.0
      %597 = vst [vmem:[#allocation2 + $0x40] sm:$0x80] 0.0
      %598 = vst [vmem:[#allocation2 + $0x48] sm:$0x80] 0.0
      %599 = vst [vmem:[#allocation2 + $0x50] sm:$0x80] 0.0
      %600 = vst [vmem:[#allocation2 + $0x58] sm:$0x80] 0.0
      %601 = vst [vmem:[#allocation2 + $0x60] sm:$0x1] 0.0
      %602 = vst [vmem:[#allocation2 + $0x68] sm:$0x1] 0.0
      %603 = vst [vmem:[#allocation2 + $0x70] sm:$0x1] 0.0
      %604 = vst [vmem:[#allocation2 + $0x78] sm:$0x1] 0.0
      %605 = vst [vmem:[#allocation2 + $0x60] sm:$0xe0] 0.0
      %606 = vst [vmem:[#allocation2 + $0x68] sm:$0xe0] 0.0
      %607 = vst [vmem:[#allocation2 + $0x70] sm:$0xe0] 0.0
      %608 = vst [vmem:[#allocation2 + $0x78] sm:$0xe0] 0.0
      %609 = vst [vmem:[#allocation2 + $0x80] sm:$0xf] 0.0
      %610 = vst [vmem:[#allocation2 + $0x88] sm:$0xf] 0.0
      %611 = vst [vmem:[#allocation2 + $0x90] sm:$0xf] 0.0
      %612 = vst [vmem:[#allocation2 + $0x98] sm:$0xf] 0.0
      %v613 = vld [vmem:[%s3] sm:$0xff]
      %v614 = vld [vmem:[%s3 + $0x8] sm:$0xff]
      %v615 = vld [vmem:[%s3 + $0x10] sm:$0xff]
      %v616 = vld [vmem:[%s3 + $0x18] sm:$0xff]
      %v617 = vld [vmem:[%s3 + $0x20] sm:$0xff]
      %v618 = vld [vmem:[%s3 + $0x28] sm:$0xff]
      %v619 = vld [vmem:[%s3 + $0x30] sm:$0xff]
      %v620 = vld [vmem:[%s3 + $0x38] sm:$0xff]
      %v621 = vld [vmem:[%s3 + $0x40] sm:$0xff]
      %v622 = vld [vmem:[%s3 + $0x48] sm:$0xff]
      %v623 = vld [vmem:[%s3 + $0x50] sm:$0xff]
      %v624 = vld [vmem:[%s3 + $0x58] sm:$0xff]
      %v625 = vld [vmem:[%s3 + $0x60] sm:$0xff]
      %v626 = vld [vmem:[%s3 + $0x68] sm:$0xff]
      %v627 = vld [vmem:[%s3 + $0x70] sm:$0xff]
      %v628 = vld [vmem:[%s3 + $0x78] sm:$0xff]
      %v629 = vld [vmem:[%s3 + $0x80] sm:$0xff]
      %v630 = vld [vmem:[%s3 + $0x88] sm:$0xff]
      %v631 = vld [vmem:[%s3 + $0x90] sm:$0xff]
      %v632 = vld [vmem:[%s3 + $0x98] sm:$0xff]
      %v633 = vld [vmem:[%s3 + $0xa0] sm:$0xff]
      %v634 = vld [vmem:[%s3 + $0xa8] sm:$0xff]
      %v635 = vld [vmem:[%s3 + $0xb0] sm:$0xff]
      %v636 = vld [vmem:[%s3 + $0xb8] sm:$0xff]
      %v637 = vld [vmem:[%s3 + $0xc0] sm:$0xff]
      %v638 = vld [vmem:[%s3 + $0xc8] sm:$0xff]
      %v639 = vld [vmem:[%s3 + $0xd0] sm:$0xff]
      %v640 = vld [vmem:[%s3 + $0xd8] sm:$0xff]
      %v641 = vld [vmem:[%s3 + $0xe0] sm:$0xff]
      %v642 = vld [vmem:[%s3 + $0xe8] sm:$0xff]
      %v643 = vld [vmem:[%s3 + $0xf0] sm:$0xff]
      %v644 = vld [vmem:[%s3 + $0xf8] sm:$0xff]
      %v645 = vld [vmem:[%s4] sm:$0x3]
      %v647 = vperm.slane %v645, 0
      %v648 = vperm.slane %v645, 1
      %651 = vmatpush.msra.mxu0 %v643
      %652 = vmatpush.msra.mxu0 %v641
      %653 = vmatpush.msra.mxu0 %v639
      %654 = vmatpush.msra.mxu0 %v637
      %655 = vmatpush.msra.mxu0 %v635
      %656 = vmatpush.msra.mxu0 %v633
      %657 = vmatpush.msra.mxu0 %v631
      %658 = vmatpush.msra.mxu0 %v629
      %659 = vmatpush.msra.mxu0 %v627
      %660 = vmatpush.msra.mxu0 %v625
      %661 = vmatpush.msra.mxu0 %v623
      %662 = vmatpush.msra.mxu0 %v621
      %663 = vmatpush.msra.mxu0 %v619
      %664 = vmatpush.msra.mxu0 %v617
      %665 = vmatpush.msra.mxu0 %v615
      %666 = vmatpush.msra.mxu0 %v613
      %667 = vmatmul.f32.gmra.mxu0 %v581
      %v668 = vpop.f32.mrf.mxu0
      %v669 = vadd.f32 %v647, %v668
      %670 = vmatmul.f32.gmra.mxu0 %v583
      %v671 = vpop.f32.mrf.mxu0
      %v672 = vadd.f32 %v647, %v671
      %673 = vdwg.mxu0
      %674 = vmatpush.msra.mxu0 %v644
      %675 = vmatpush.msra.mxu0 %v642
      %676 = vmatpush.msra.mxu0 %v640
      %677 = vmatpush.msra.mxu0 %v638
      %678 = vmatpush.msra.mxu0 %v636
      %679 = vmatpush.msra.mxu0 %v634
      %680 = vmatpush.msra.mxu0 %v632
      %681 = vmatpush.msra.mxu0 %v630
      %682 = vmatpush.msra.mxu0 %v628
      %683 = vmatpush.msra.mxu0 %v626
      %684 = vmatpush.msra.mxu0 %v624
      %685 = vmatpush.msra.mxu0 %v622
      %686 = vmatpush.msra.mxu0 %v620
      %687 = vmatpush.msra.mxu0 %v618
      %688 = vmatpush.msra.mxu0 %v616
      %689 = vmatpush.msra.mxu0 %v614
      %690 = vmatmul.f32.gmra.mxu0 %v581
      %v691 = vpop.f32.mrf.mxu0
      %v692 = vadd.f32 %v648, %v691
      %693 = vmatmul.f32.gmra.mxu0 %v583
      %v694 = vpop.f32.mrf.mxu0
      %v695 = vadd.f32 %v648, %v694
      %696 = vdwg.mxu0
      %v697 = vmax.f32 %v669, 0.0
      %v698 = vmax.f32 %v692, 0.0
      %v699 = vmax.f32 %v672, 0.0
      %v700 = vmax.f32 %v695, 0.0
      %v703 = vrot.slane %v697, 1
      %v704 = vrot.slane %v698, 1
      %707 = vst [vmem:[#allocation2] sm:$0x80] %v703
      %708 = vst [vmem:[#allocation2 + $0x8] sm:$0x80] %v704
      %709 = vst [vmem:[#allocation2 + $0x20] sm:$0x7] %v703
      %710 = vst [vmem:[#allocation2 + $0x28] sm:$0x7] %v704
      %v711 = vrot.slane %v697, 7
      %v712 = vrot.slane %v698, 7
      %715 = vst [vmem:[#allocation2 + $0x20] sm:$0xe0] %v711
      %716 = vst [vmem:[#allocation2 + $0x28] sm:$0xe0] %v712
      %717 = vst [vmem:[#allocation2 + $0x40] sm:$0x1] %v711
      %718 = vst [vmem:[#allocation2 + $0x48] sm:$0x1] %v712
      %v721 = vrot.slane %v699, 5
      %v722 = vrot.slane %v700, 5
      %725 = vst [vmem:[#allocation2 + $0x40] sm:$0x78] %v721
      %726 = vst [vmem:[#allocation2 + $0x48] sm:$0x78] %v722
      %v727 = vrot.slane %v699, 3
      %v728 = vrot.slane %v700, 3
      %731 = vst [vmem:[#allocation2 + $0x60] sm:$0x1e] %v727
      %732 = vst [vmem:[#allocation2 + $0x68] sm:$0x1e] %v728
      %v733 = vld [vmem:[%s3] sm:$0xff]
      %v734 = vld [vmem:[%s3 + $0x8] sm:$0xff]
      %v735 = vld [vmem:[%s3 + $0x10] sm:$0xff]
      %v736 = vld [vmem:[%s3 + $0x18] sm:$0xff]
      %v737 = vld [vmem:[%s3 + $0x20] sm:$0xff]
      %v738 = vld [vmem:[%s3 + $0x28] sm:$0xff]
      %v739 = vld [vmem:[%s3 + $0x30] sm:$0xff]
      %v740 = vld [vmem:[%s3 + $0x38] sm:$0xff]
      %v741 = vld [vmem:[%s3 + $0x40] sm:$0xff]
      %v742 = vld [vmem:[%s3 + $0x48] sm:$0xff]
      %v743 = vld [vmem:[%s3 + $0x50] sm:$0xff]
      %v744 = vld [vmem:[%s3 + $0x58] sm:$0xff]
      %v745 = vld [vmem:[%s3 + $0x60] sm:$0xff]
      %v746 = vld [vmem:[%s3 + $0x68] sm:$0xff]
      %v747 = vld [vmem:[%s3 + $0x70] sm:$0xff]
      %v748 = vld [vmem:[%s3 + $0x78] sm:$0xff]
      %v749 = vld [vmem:[%s3 + $0x80] sm:$0xff]
      %v750 = vld [vmem:[%s3 + $0x88] sm:$0xff]
      %v751 = vld [vmem:[%s3 + $0x90] sm:$0xff]
      %v752 = vld [vmem:[%s3 + $0x98] sm:$0xff]
      %v753 = vld [vmem:[%s3 + $0xa0] sm:$0xff]
      %v754 = vld [vmem:[%s3 + $0xa8] sm:$0xff]
      %v755 = vld [vmem:[%s3 + $0xb0] sm:$0xff]
      %v756 = vld [vmem:[%s3 + $0xb8] sm:$0xff]
      %v757 = vld [vmem:[%s3 + $0xc0] sm:$0xff]
      %v758 = vld [vmem:[%s3 + $0xc8] sm:$0xff]
      %v759 = vld [vmem:[%s3 + $0xd0] sm:$0xff]
      %v760 = vld [vmem:[%s3 + $0xd8] sm:$0xff]
      %v761 = vld [vmem:[%s3 + $0xe0] sm:$0xff]
      %v762 = vld [vmem:[%s3 + $0xe8] sm:$0xff]
      %v763 = vld [vmem:[%s3 + $0xf0] sm:$0xff]
      %v764 = vld [vmem:[%s3 + $0xf8] sm:$0xff]
      %v765 = vld [vmem:[%s4] sm:$0x3]
      %v767 = vperm.slane %v765, 0
      %v768 = vperm.slane %v765, 1
      %771 = vmatpush.msra.mxu0 %v763
      %772 = vmatpush.msra.mxu0 %v761
      %773 = vmatpush.msra.mxu0 %v759
      %774 = vmatpush.msra.mxu0 %v757
      %775 = vmatpush.msra.mxu0 %v755
      %776 = vmatpush.msra.mxu0 %v753
      %777 = vmatpush.msra.mxu0 %v751
      %778 = vmatpush.msra.mxu0 %v749
      %779 = vmatpush.msra.mxu0 %v747
      %780 = vmatpush.msra.mxu0 %v745
      %781 = vmatpush.msra.mxu0 %v743
      %782 = vmatpush.msra.mxu0 %v741
      %783 = vmatpush.msra.mxu0 %v739
      %784 = vmatpush.msra.mxu0 %v737
      %785 = vmatpush.msra.mxu0 %v735
      %786 = vmatpush.msra.mxu0 %v733
      %787 = vmatmul.f32.gmra.mxu0 %v582
      %v788 = vpop.f32.mrf.mxu0
      %v789 = vadd.f32 %v767, %v788
      %790 = vmatmul.f32.gmra.mxu0 %v584
      %v791 = vpop.f32.mrf.mxu0
      %v792 = vadd.f32 %v767, %v791
      %793 = vdwg.mxu0
      %794 = vmatpush.msra.mxu0 %v764
      %795 = vmatpush.msra.mxu0 %v762
      %796 = vmatpush.msra.mxu0 %v760
      %797 = vmatpush.msra.mxu0 %v758
      %798 = vmatpush.msra.mxu0 %v756
      %799 = vmatpush.msra.mxu0 %v754
      %800 = vmatpush.msra.mxu0 %v752
      %801 = vmatpush.msra.mxu0 %v750
      %802 = vmatpush.msra.mxu0 %v748
      %803 = vmatpush.msra.mxu0 %v746
      %804 = vmatpush.msra.mxu0 %v744
      %805 = vmatpush.msra.mxu0 %v742
      %806 = vmatpush.msra.mxu0 %v740
      %807 = vmatpush.msra.mxu0 %v738
      %808 = vmatpush.msra.mxu0 %v736
      %809 = vmatpush.msra.mxu0 %v734
      %810 = vmatmul.f32.gmra.mxu0 %v582
      %v811 = vpop.f32.mrf.mxu0
      %v812 = vadd.f32 %v768, %v811
      %813 = vmatmul.f32.gmra.mxu0 %v584
      %v814 = vpop.f32.mrf.mxu0
      %v815 = vadd.f32 %v768, %v814
      %816 = vdwg.mxu0
      %v817 = vmax.f32 %v789, 0.0
      %v818 = vmax.f32 %v812, 0.0
      %v819 = vmax.f32 %v792, 0.0
      %v820 = vmax.f32 %v815, 0.0
      %v823 = vrot.slane %v817, 1
      %v824 = vrot.slane %v818, 1
      %827 = vst [vmem:[#allocation2 + $0x10] sm:$0x80] %v823
      %828 = vst [vmem:[#allocation2 + $0x18] sm:$0x80] %v824
      %829 = vst [vmem:[#allocation2 + $0x30] sm:$0x7] %v823
      %830 = vst [vmem:[#allocation2 + $0x38] sm:$0x7] %v824
      %v831 = vrot.slane %v817, 7
      %v832 = vrot.slane %v818, 7
      %835 = vst [vmem:[#allocation2 + $0x30] sm:$0xe0] %v831
      %836 = vst [vmem:[#allocation2 + $0x38] sm:$0xe0] %v832
      %837 = vst [vmem:[#allocation2 + $0x50] sm:$0x1] %v831
      %838 = vst [vmem:[#allocation2 + $0x58] sm:$0x1] %v832
      %v841 = vrot.slane %v819, 5
      %v842 = vrot.slane %v820, 5
      %845 = vst [vmem:[#allocation2 + $0x50] sm:$0x78] %v841
      %846 = vst [vmem:[#allocation2 + $0x58] sm:$0x78] %v842
      %v847 = vrot.slane %v819, 3
      %v848 = vrot.slane %v820, 3
      %851 = vst [vmem:[#allocation2 + $0x70] sm:$0x1e] %v847
      %852 = vst [vmem:[#allocation2 + $0x78] sm:$0x1e] %v848
      %v853 = vld [vmem:[#allocation2 + $0x18] sm:$0xff]
      %v854 = vld [vmem:[#allocation2 + $0x38] sm:$0xff]
      %v855 = vld [vmem:[#allocation2 + $0x58] sm:$0x3f]
      %v856 = vld [vmem:[%s5] sm:$0xff]
      %v857 = vld [vmem:[%s5 + $0x8] sm:$0xff]
      %v858 = vld [vmem:[%s5 + $0x10] sm:$0xff]
      %v859 = vld [vmem:[%s5 + $0x18] sm:$0xff]
      %v860 = vld [vmem:[#allocation2 + $0x18] sm:$0xfe]
      %v861 = vld [vmem:[#allocation2 + $0x58] sm:$0x7f]
      %v862 = vld [vmem:[%s6] sm:$0xff]
      %v863 = vld [vmem:[%s6 + $0x8] sm:$0xff]
      %v864 = vld [vmem:[%s6 + $0x10] sm:$0xff]
      %v865 = vld [vmem:[%s6 + $0x18] sm:$0xff]
      %v866 = vld [vmem:[%s6 + $0x20] sm:$0xff]
      %v867 = vld [vmem:[%s6 + $0x28] sm:$0xff]
      %v868 = vld [vmem:[%s6 + $0x30] sm:$0xff]
      %v869 = vld [vmem:[%s6 + $0x38] sm:$0xff]
      %v870 = vld [vmem:[%s6 + $0x40] sm:$0xff]
      %v871 = vld [vmem:[%s6 + $0x48] sm:$0xff]
      %v872 = vld [vmem:[%s6 + $0x50] sm:$0xff]
      %v873 = vld [vmem:[%s6 + $0x58] sm:$0xff]
      %v874 = vld [vmem:[%s6 + $0x60] sm:$0xff]
      %v875 = vld [vmem:[%s6 + $0x68] sm:$0xff]
      %v876 = vld [vmem:[%s6 + $0x70] sm:$0xff]
      %v877 = vld [vmem:[%s6 + $0x78] sm:$0xff]
      %vm881 = vcmask 1046528
      %v882 = vrot.slane %v860, 1
      %v883 = vrot.slane %v854, 1
      %v884 = vsel %vm881, %v882, %v883
      %v885 = vrot.slane %v861, 1
      %v886 = vsel %vm881, %v883, %v885
      %890 = vmatpush.msra.mxu0 %v877
      %891 = vmatpush.msra.mxu0 %v876
      %892 = vmatpush.msra.mxu0 %v875
      %893 = vmatpush.msra.mxu0 %v874
      %894 = vmatpush.msra.mxu0 %v873
      %895 = vmatpush.msra.mxu0 %v872
      %896 = vmatpush.msra.mxu0 %v871
      %897 = vmatpush.msra.mxu0 %v870
      %898 = vmatpush.msra.mxu0 %v869
      %899 = vmatpush.msra.mxu0 %v868
      %900 = vmatpush.msra.mxu0 %v867
      %901 = vmatpush.msra.mxu0 %v866
      %902 = vmatpush.msra.mxu0 %v865
      %903 = vmatpush.msra.mxu0 %v864
      %904 = vmatpush.msra.mxu0 %v863
      %905 = vmatpush.msra.mxu0 %v862
      %906 = vmatmul.f32.gmra.mxu0 %v884
      %v907 = vpop.f32.mrf.mxu0
      %v908 = vadd.f32 0.0, %v907
      %909 = vmatmul.f32.gmra.mxu0 %v886
      %v910 = vpop.f32.mrf.mxu0
      %v911 = vadd.f32 0.0, %v910
      %912 = vmatmul.f32.gmra.mxu0 %v885
      %v913 = vpop.f32.mrf.mxu0
      %v914 = vadd.f32 0.0, %v913
      %915 = vdwg.mxu0
      %918 = vrot.lane.b32.xlu0 %v853, 32
      %v919 = vpop.permute.xlu0 %918
      %920 = vrot.lane.b32.xlu0 %v854, 32
      %v921 = vpop.permute.xlu0 %920
      %922 = vrot.lane.b32.xlu0 %v855, 32
      %v923 = vpop.permute.xlu0 %922
      %vm924 = vcmask 261120
      %v925 = vsel %vm924, %v919, 0
      %v927 = vsel %vm924, %v921, 0
      %v929 = vsel %vm924, %v923, 0
      %931 = vmatpush.msra.mxu0 0.0
      %932 = vmatpush.msra.mxu0 0.0
      %933 = vmatpush.msra.mxu0 0.0
      %934 = vmatpush.msra.mxu0 0.0
      %935 = vmatpush.msra.mxu0 0.0
      %936 = vmatpush.msra.mxu0 0.0
      %937 = vmatpush.msra.mxu0 0.0
      %938 = vmatpush.msra.mxu0 0.0
      %939 = vmatpush.msra.mxu0 0.0
      %940 = vmatpush.msra.mxu0 0.0
      %941 = vmatpush.msra.mxu0 0.0
      %942 = vmatpush.msra.mxu0 0.0
      %943 = vmatpush.msra.mxu0 %v859
      %944 = vmatpush.msra.mxu0 %v858
      %945 = vmatpush.msra.mxu0 %v857
      %946 = vmatpush.msra.mxu0 %v856
      %947 = vmatmul.f32.gmra.mxu0 %v925
      %v948 = vpop.f32.mrf.mxu0
      %v949 = vadd.f32 %v908, %v948
      %950 = vmatmul.f32.gmra.mxu0 %v927
      %v951 = vpop.f32.mrf.mxu0
      %v952 = vadd.f32 %v911, %v951
      %953 = vmatmul.f32.gmra.mxu0 %v929
      %v954 = vpop.f32.mrf.mxu0
      %v955 = vadd.f32 %v914, %v954
      %956 = vdwg.mxu0
      %v957 = vld [vmem:[#allocation2 + $0x18] sm:$0xfc]
      %v958 = vld [vmem:[#allocation2 + $0x58] sm:$0xff]
      %v959 = vld [vmem:[%s7] sm:$0xff]
      %v960 = vld [vmem:[%s7 + $0x8] sm:$0xff]
      %v961 = vld [vmem:[%s7 + $0x10] sm:$0xff]
      %v962 = vld [vmem:[%s7 + $0x18] sm:$0xff]
      %vm965 = vcmask 1045504
      %v966 = vrot.slane %v957, 2
      %v967 = vrot.slane %v854, 2
      %v968 = vsel %vm965, %v966, %v967
      %v969 = vrot.slane %v958, 2
      %v970 = vsel %vm965, %v967, %v969
      %v971 = vsel %vm924, %v968, 0
      %v973 = vsel %vm924, %v970, 0
      %v975 = vsel %vm924, %v969, 0
      %977 = vmatpush.msra.mxu0 0.0
      %978 = vmatpush.msra.mxu0 0.0
      %979 = vmatpush.msra.mxu0 0.0
      %980 = vmatpush.msra.mxu0 0.0
      %981 = vmatpush.msra.mxu0 0.0
      %982 = vmatpush.msra.mxu0 0.0
      %983 = vmatpush.msra.mxu0 0.0
      %984 = vmatpush.msra.mxu0 0.0
      %985 = vmatpush.msra.mxu0 0.0
      %986 = vmatpush.msra.mxu0 0.0
      %987 = vmatpush.msra.mxu0 0.0
      %988 = vmatpush.msra.mxu0 0.0
      %989 = vmatpush.msra.mxu0 %v962
      %990 = vmatpush.msra.mxu0 %v961
      %991 = vmatpush.msra.mxu0 %v960
      %992 = vmatpush.msra.mxu0 %v959
      %993 = vmatmul.f32.gmra.mxu0 %v971
      %v994 = vpop.f32.mrf.mxu0
      %v995 = vadd.f32 0.0, %v994
      %996 = vmatmul.f32.gmra.mxu0 %v973
      %v997 = vpop.f32.mrf.mxu0
      %v998 = vadd.f32 0.0, %v997
      %999 = vmatmul.f32.gmra.mxu0 %v975
      %v1000 = vpop.f32.mrf.mxu0
      %v1001 = vadd.f32 0.0, %v1000
      %1002 = vdwg.mxu0
      %v1003 = vadd.f32 %v949, %v995
      %v1004 = vadd.f32 %v952, %v998
      %v1005 = vadd.f32 %v955, %v1001
      %v1006 = vld [vmem:[#allocation2] sm:$0xc0]
      %v1007 = vld [vmem:[#allocation2 + $0x8] sm:$0xc0]
      %v1008 = vld [vmem:[#allocation2 + $0x10] sm:$0xc0]
      %v1009 = vld [vmem:[#allocation2 + $0x18] sm:$0xc0]
      %v1010 = vld [vmem:[#allocation2 + $0x20] sm:$0xff]
      %v1011 = vld [vmem:[#allocation2 + $0x28] sm:$0xff]
      %v1012 = vld [vmem:[#allocation2 + $0x30] sm:$0xff]
      %v1013 = vld [vmem:[#allocation2 + $0x38] sm:$0xff]
      %v1014 = vld [vmem:[#allocation2 + $0x40] sm:$0xff]
      %v1015 = vld [vmem:[#allocation2 + $0x48] sm:$0xff]
      %v1016 = vld [vmem:[#allocation2 + $0x50] sm:$0xff]
      %v1017 = vld [vmem:[#allocation2 + $0x58] sm:$0xff]
      %v1018 = vld [vmem:[#allocation2 + $0x60] sm:$0xf]
      %v1019 = vld [vmem:[#allocation2 + $0x68] sm:$0xf]
      %v1020 = vld [vmem:[#allocation2 + $0x70] sm:$0xf]
      %v1021 = vld [vmem:[#allocation2 + $0x78] sm:$0xf]
      %v1022 = vld [vmem:[%s8] sm:$0xff]
      %v1023 = vld [vmem:[%s8 + $0x8] sm:$0xff]
      %v1024 = vld [vmem:[%s8 + $0x10] sm:$0xff]
      %v1025 = vld [vmem:[%s8 + $0x18] sm:$0xff]
      %v1026 = vld [vmem:[%s8 + $0x20] sm:$0xff]
      %v1027 = vld [vmem:[%s8 + $0x28] sm:$0xff]
      %v1028 = vld [vmem:[%s8 + $0x30] sm:$0xff]
      %v1029 = vld [vmem:[%s8 + $0x38] sm:$0xff]
      %v1030 = vld [vmem:[%s8 + $0x40] sm:$0xff]
      %v1031 = vld [vmem:[%s8 + $0x48] sm:$0xff]
      %v1032 = vld [vmem:[%s8 + $0x50] sm:$0xff]
      %v1033 = vld [vmem:[%s8 + $0x58] sm:$0xff]
      %v1034 = vld [vmem:[%s8 + $0x60] sm:$0xff]
      %v1035 = vld [vmem:[%s8 + $0x68] sm:$0xff]
      %v1036 = vld [vmem:[%s8 + $0x70] sm:$0xff]
      %v1037 = vld [vmem:[%s8 + $0x78] sm:$0xff]
      %v1038 = vld [vmem:[%s8 + $0x80] sm:$0xff]
      %v1039 = vld [vmem:[%s8 + $0x88] sm:$0xff]
      %v1040 = vld [vmem:[%s8 + $0x90] sm:$0xff]
      %v1041 = vld [vmem:[%s8 + $0x98] sm:$0xff]
      %v1042 = vld [vmem:[%s8 + $0xa0] sm:$0xff]
      %v1043 = vld [vmem:[%s8 + $0xa8] sm:$0xff]
      %v1044 = vld [vmem:[%s8 + $0xb0] sm:$0xff]
      %v1045 = vld [vmem:[%s8 + $0xb8] sm:$0xff]
      %v1046 = vld [vmem:[%s8 + $0xc0] sm:$0xff]
      %v1047 = vld [vmem:[%s8 + $0xc8] sm:$0xff]
      %v1048 = vld [vmem:[%s8 + $0xd0] sm:$0xff]
      %v1049 = vld [vmem:[%s8 + $0xd8] sm:$0xff]
      %v1050 = vld [vmem:[%s8 + $0xe0] sm:$0xff]
      %v1051 = vld [vmem:[%s8 + $0xe8] sm:$0xff]
      %v1052 = vld [vmem:[%s8 + $0xf0] sm:$0xff]
      %v1053 = vld [vmem:[%s8 + $0xf8] sm:$0xff]
      %v1054 = vld [vmem:[%s8 + $0x100] sm:$0xff]
      %v1055 = vld [vmem:[%s8 + $0x108] sm:$0xff]
      %v1056 = vld [vmem:[%s8 + $0x110] sm:$0xff]
      %v1057 = vld [vmem:[%s8 + $0x118] sm:$0xff]
      %v1058 = vld [vmem:[%s8 + $0x120] sm:$0xff]
      %v1059 = vld [vmem:[%s8 + $0x128] sm:$0xff]
      %v1060 = vld [vmem:[%s8 + $0x130] sm:$0xff]
      %v1061 = vld [vmem:[%s8 + $0x138] sm:$0xff]
      %v1062 = vld [vmem:[%s8 + $0x140] sm:$0xff]
      %v1063 = vld [vmem:[%s8 + $0x148] sm:$0xff]
      %v1064 = vld [vmem:[%s8 + $0x150] sm:$0xff]
      %v1065 = vld [vmem:[%s8 + $0x158] sm:$0xff]
      %v1066 = vld [vmem:[%s8 + $0x160] sm:$0xff]
      %v1067 = vld [vmem:[%s8 + $0x168] sm:$0xff]
      %v1068 = vld [vmem:[%s8 + $0x170] sm:$0xff]
      %v1069 = vld [vmem:[%s8 + $0x178] sm:$0xff]
      %v1070 = vld [vmem:[%s8 + $0x180] sm:$0xff]
      %v1071 = vld [vmem:[%s8 + $0x188] sm:$0xff]
      %v1072 = vld [vmem:[%s8 + $0x190] sm:$0xff]
      %v1073 = vld [vmem:[%s8 + $0x198] sm:$0xff]
      %v1074 = vld [vmem:[%s8 + $0x1a0] sm:$0xff]
      %v1075 = vld [vmem:[%s8 + $0x1a8] sm:$0xff]
      %v1076 = vld [vmem:[%s8 + $0x1b0] sm:$0xff]
      %v1077 = vld [vmem:[%s8 + $0x1b8] sm:$0xff]
      %v1078 = vld [vmem:[%s8 + $0x1c0] sm:$0xff]
      %v1079 = vld [vmem:[%s8 + $0x1c8] sm:$0xff]
      %v1080 = vld [vmem:[%s8 + $0x1d0] sm:$0xff]
      %v1081 = vld [vmem:[%s8 + $0x1d8] sm:$0xff]
      %v1082 = vld [vmem:[%s8 + $0x1e0] sm:$0xff]
      %v1083 = vld [vmem:[%s8 + $0x1e8] sm:$0xff]
      %v1084 = vld [vmem:[%s8 + $0x1f0] sm:$0xff]
      %v1085 = vld [vmem:[%s8 + $0x1f8] sm:$0xff]
      %vm1102 = vcmask 1041408
      %v1103 = vrot.slane %v1006, 6
      %v1104 = vrot.slane %v1010, 6
      %v1105 = vsel %vm1102, %v1103, %v1104
      %v1106 = vrot.slane %v1007, 6
      %v1107 = vrot.slane %v1011, 6
      %v1108 = vsel %vm1102, %v1106, %v1107
      %v1109 = vrot.slane %v1008, 6
      %v1110 = vrot.slane %v1012, 6
      %v1111 = vsel %vm1102, %v1109, %v1110
      %v1112 = vrot.slane %v1009, 6
      %v1113 = vrot.slane %v1013, 6
      %v1114 = vsel %vm1102, %v1112, %v1113
      %v1115 = vrot.slane %v1014, 6
      %v1116 = vsel %vm1102, %v1104, %v1115
      %v1117 = vrot.slane %v1015, 6
      %v1118 = vsel %vm1102, %v1107, %v1117
      %v1119 = vrot.slane %v1016, 6
      %v1120 = vsel %vm1102, %v1110, %v1119
      %v1121 = vrot.slane %v1017, 6
      %v1122 = vsel %vm1102, %v1113, %v1121
      %v1123 = vrot.slane %v1018, 6
      %v1124 = vsel %vm1102, %v1115, %v1123
      %v1125 = vrot.slane %v1019, 6
      %v1126 = vsel %vm1102, %v1117, %v1125
      %v1127 = vrot.slane %v1020, 6
      %v1128 = vsel %vm1102, %v1119, %v1127
      %v1129 = vrot.slane %v1021, 6
      %v1130 = vsel %vm1102, %v1121, %v1129
      %1143 = vmatpush.msra.mxu0 %v1037
      %1144 = vmatpush.msra.mxu0 %v1036
      %1145 = vmatpush.msra.mxu0 %v1035
      %1146 = vmatpush.msra.mxu0 %v1034
      %1147 = vmatpush.msra.mxu0 %v1033
      %1148 = vmatpush.msra.mxu0 %v1032
      %1149 = vmatpush.msra.mxu0 %v1031
      %1150 = vmatpush.msra.mxu0 %v1030
      %1151 = vmatpush.msra.mxu0 %v1029
      %1152 = vmatpush.msra.mxu0 %v1028
      %1153 = vmatpush.msra.mxu0 %v1027
      %1154 = vmatpush.msra.mxu0 %v1026
      %1155 = vmatpush.msra.mxu0 %v1025
      %1156 = vmatpush.msra.mxu0 %v1024
      %1157 = vmatpush.msra.mxu0 %v1023
      %1158 = vmatpush.msra.mxu0 %v1022
      %1159 = vmatmul.f32.gmra.mxu0 %v1105
      %v1160 = vpop.f32.mrf.mxu0
      %v1161 = vadd.f32 0.0, %v1160
      %1162 = vmatmul.f32.gmra.mxu0 %v1116
      %v1163 = vpop.f32.mrf.mxu0
      %v1164 = vadd.f32 0.0, %v1163
      %1165 = vmatmul.f32.gmra.mxu0 %v1124
      %v1166 = vpop.f32.mrf.mxu0
      %v1167 = vadd.f32 0.0, %v1166
      %1168 = vdwg.mxu0
      %1169 = vmatpush.msra.mxu0 %v1053
      %1170 = vmatpush.msra.mxu0 %v1052
      %1171 = vmatpush.msra.mxu0 %v1051
      %1172 = vmatpush.msra.mxu0 %v1050
      %1173 = vmatpush.msra.mxu0 %v1049
      %1174 = vmatpush.msra.mxu0 %v1048
      %1175 = vmatpush.msra.mxu0 %v1047
      %1176 = vmatpush.msra.mxu0 %v1046
      %1177 = vmatpush.msra.mxu0 %v1045
      %1178 = vmatpush.msra.mxu0 %v1044
      %1179 = vmatpush.msra.mxu0 %v1043
      %1180 = vmatpush.msra.mxu0 %v1042
      %1181 = vmatpush.msra.mxu0 %v1041
      %1182 = vmatpush.msra.mxu0 %v1040
      %1183 = vmatpush.msra.mxu0 %v1039
      %1184 = vmatpush.msra.mxu0 %v1038
      %1185 = vmatmul.f32.gmra.mxu0 %v1108
      %v1186 = vpop.f32.mrf.mxu0
      %v1187 = vadd.f32 %v1161, %v1186
      %1188 = vmatmul.f32.gmra.mxu0 %v1118
      %v1189 = vpop.f32.mrf.mxu0
      %v1190 = vadd.f32 %v1164, %v1189
      %1191 = vmatmul.f32.gmra.mxu0 %v1126
      %v1192 = vpop.f32.mrf.mxu0
      %v1193 = vadd.f32 %v1167, %v1192
      %1194 = vdwg.mxu0
      %1195 = vmatpush.msra.mxu0 %v1069
      %1196 = vmatpush.msra.mxu0 %v1068
      %1197 = vmatpush.msra.mxu0 %v1067
      %1198 = vmatpush.msra.mxu0 %v1066
      %1199 = vmatpush.msra.mxu0 %v1065
      %1200 = vmatpush.msra.mxu0 %v1064
      %1201 = vmatpush.msra.mxu0 %v1063
      %1202 = vmatpush.msra.mxu0 %v1062
      %1203 = vmatpush.msra.mxu0 %v1061
      %1204 = vmatpush.msra.mxu0 %v1060
      %1205 = vmatpush.msra.mxu0 %v1059
      %1206 = vmatpush.msra.mxu0 %v1058
      %1207 = vmatpush.msra.mxu0 %v1057
      %1208 = vmatpush.msra.mxu0 %v1056
      %1209 = vmatpush.msra.mxu0 %v1055
      %1210 = vmatpush.msra.mxu0 %v1054
      %1211 = vmatmul.f32.gmra.mxu0 %v1111
      %v1212 = vpop.f32.mrf.mxu0
      %v1213 = vadd.f32 %v1187, %v1212
      %1214 = vmatmul.f32.gmra.mxu0 %v1120
      %v1215 = vpop.f32.mrf.mxu0
      %v1216 = vadd.f32 %v1190, %v1215
      %1217 = vmatmul.f32.gmra.mxu0 %v1128
      %v1218 = vpop.f32.mrf.mxu0
      %v1219 = vadd.f32 %v1193, %v1218
      %1220 = vdwg.mxu0
      %1221 = vmatpush.msra.mxu0 %v1085
      %1222 = vmatpush.msra.mxu0 %v1084
      %1223 = vmatpush.msra.mxu0 %v1083
      %1224 = vmatpush.msra.mxu0 %v1082
      %1225 = vmatpush.msra.mxu0 %v1081
      %1226 = vmatpush.msra.mxu0 %v1080
      %1227 = vmatpush.msra.mxu0 %v1079
      %1228 = vmatpush.msra.mxu0 %v1078
      %1229 = vmatpush.msra.mxu0 %v1077
      %1230 = vmatpush.msra.mxu0 %v1076
      %1231 = vmatpush.msra.mxu0 %v1075
      %1232 = vmatpush.msra.mxu0 %v1074
      %1233 = vmatpush.msra.mxu0 %v1073
      %1234 = vmatpush.msra.mxu0 %v1072
      %1235 = vmatpush.msra.mxu0 %v1071
      %1236 = vmatpush.msra.mxu0 %v1070
      %1237 = vmatmul.f32.gmra.mxu0 %v1114
      %v1238 = vpop.f32.mrf.mxu0
      %v1239 = vadd.f32 %v1213, %v1238
      %1240 = vmatmul.f32.gmra.mxu0 %v1122
      %v1241 = vpop.f32.mrf.mxu0
      %v1242 = vadd.f32 %v1216, %v1241
      %1243 = vmatmul.f32.gmra.mxu0 %v1130
      %v1244 = vpop.f32.mrf.mxu0
      %v1245 = vadd.f32 %v1219, %v1244
      %1246 = vdwg.mxu0
      %v1247 = vadd.f32 %v1003, %v1239
      %v1248 = vadd.f32 %v1004, %v1242
      %v1249 = vadd.f32 %v1005, %v1245
      %v1250 = vld [vmem:[#allocation2] sm:$0x80]
      %v1251 = vld [vmem:[#allocation2 + $0x8] sm:$0x80]
      %v1252 = vld [vmem:[#allocation2 + $0x10] sm:$0x80]
      %v1253 = vld [vmem:[#allocation2 + $0x18] sm:$0x80]
      %v1254 = vld [vmem:[#allocation2 + $0x60] sm:$0x1f]
      %v1255 = vld [vmem:[#allocation2 + $0x68] sm:$0x1f]
      %v1256 = vld [vmem:[#allocation2 + $0x70] sm:$0x1f]
      %v1257 = vld [vmem:[#allocation2 + $0x78] sm:$0x1f]
      %v1258 = vld [vmem:[%s9] sm:$0xff]
      %v1259 = vld [vmem:[%s9 + $0x8] sm:$0xff]
      %v1260 = vld [vmem:[%s9 + $0x10] sm:$0xff]
      %v1261 = vld [vmem:[%s9 + $0x18] sm:$0xff]
      %v1262 = vld [vmem:[%s9 + $0x20] sm:$0xff]
      %v1263 = vld [vmem:[%s9 + $0x28] sm:$0xff]
      %v1264 = vld [vmem:[%s9 + $0x30] sm:$0xff]
      %v1265 = vld [vmem:[%s9 + $0x38] sm:$0xff]
      %v1266 = vld [vmem:[%s9 + $0x40] sm:$0xff]
      %v1267 = vld [vmem:[%s9 + $0x48] sm:$0xff]
      %v1268 = vld [vmem:[%s9 + $0x50] sm:$0xff]
      %v1269 = vld [vmem:[%s9 + $0x58] sm:$0xff]
      %v1270 = vld [vmem:[%s9 + $0x60] sm:$0xff]
      %v1271 = vld [vmem:[%s9 + $0x68] sm:$0xff]
      %v1272 = vld [vmem:[%s9 + $0x70] sm:$0xff]
      %v1273 = vld [vmem:[%s9 + $0x78] sm:$0xff]
      %v1274 = vld [vmem:[%s9 + $0x80] sm:$0xff]
      %v1275 = vld [vmem:[%s9 + $0x88] sm:$0xff]
      %v1276 = vld [vmem:[%s9 + $0x90] sm:$0xff]
      %v1277 = vld [vmem:[%s9 + $0x98] sm:$0xff]
      %v1278 = vld [vmem:[%s9 + $0xa0] sm:$0xff]
      %v1279 = vld [vmem:[%s9 + $0xa8] sm:$0xff]
      %v1280 = vld [vmem:[%s9 + $0xb0] sm:$0xff]
      %v1281 = vld [vmem:[%s9 + $0xb8] sm:$0xff]
      %v1282 = vld [vmem:[%s9 + $0xc0] sm:$0xff]
      %v1283 = vld [vmem:[%s9 + $0xc8] sm:$0xff]
      %v1284 = vld [vmem:[%s9 + $0xd0] sm:$0xff]
      %v1285 = vld [vmem:[%s9 + $0xd8] sm:$0xff]
      %v1286 = vld [vmem:[%s9 + $0xe0] sm:$0xff]
      %v1287 = vld [vmem:[%s9 + $0xe8] sm:$0xff]
      %v1288 = vld [vmem:[%s9 + $0xf0] sm:$0xff]
      %v1289 = vld [vmem:[%s9 + $0xf8] sm:$0xff]
      %v1290 = vld [vmem:[%s9 + $0x100] sm:$0xff]
      %v1291 = vld [vmem:[%s9 + $0x108] sm:$0xff]
      %v1292 = vld [vmem:[%s9 + $0x110] sm:$0xff]
      %v1293 = vld [vmem:[%s9 + $0x118] sm:$0xff]
      %v1294 = vld [vmem:[%s9 + $0x120] sm:$0xff]
      %v1295 = vld [vmem:[%s9 + $0x128] sm:$0xff]
      %v1296 = vld [vmem:[%s9 + $0x130] sm:$0xff]
      %v1297 = vld [vmem:[%s9 + $0x138] sm:$0xff]
      %v1298 = vld [vmem:[%s9 + $0x140] sm:$0xff]
      %v1299 = vld [vmem:[%s9 + $0x148] sm:$0xff]
      %v1300 = vld [vmem:[%s9 + $0x150] sm:$0xff]
      %v1301 = vld [vmem:[%s9 + $0x158] sm:$0xff]
      %v1302 = vld [vmem:[%s9 + $0x160] sm:$0xff]
      %v1303 = vld [vmem:[%s9 + $0x168] sm:$0xff]
      %v1304 = vld [vmem:[%s9 + $0x170] sm:$0xff]
      %v1305 = vld [vmem:[%s9 + $0x178] sm:$0xff]
      %v1306 = vld [vmem:[%s9 + $0x180] sm:$0xff]
      %v1307 = vld [vmem:[%s9 + $0x188] sm:$0xff]
      %v1308 = vld [vmem:[%s9 + $0x190] sm:$0xff]
      %v1309 = vld [vmem:[%s9 + $0x198] sm:$0xff]
      %v1310 = vld [vmem:[%s9 + $0x1a0] sm:$0xff]
      %v1311 = vld [vmem:[%s9 + $0x1a8] sm:$0xff]
      %v1312 = vld [vmem:[%s9 + $0x1b0] sm:$0xff]
      %v1313 = vld [vmem:[%s9 + $0x1b8] sm:$0xff]
      %v1314 = vld [vmem:[%s9 + $0x1c0] sm:$0xff]
      %v1315 = vld [vmem:[%s9 + $0x1c8] sm:$0xff]
      %v1316 = vld [vmem:[%s9 + $0x1d0] sm:$0xff]
      %v1317 = vld [vmem:[%s9 + $0x1d8] sm:$0xff]
      %v1318 = vld [vmem:[%s9 + $0x1e0] sm:$0xff]
      %v1319 = vld [vmem:[%s9 + $0x1e8] sm:$0xff]
      %v1320 = vld [vmem:[%s9 + $0x1f0] sm:$0xff]
      %v1321 = vld [vmem:[%s9 + $0x1f8] sm:$0xff]
      %vm1330 = vcmask 1040384
      %v1331 = vrot.slane %v1250, 7
      %v1332 = vrot.slane %v1010, 7
      %v1333 = vsel %vm1330, %v1331, %v1332
      %v1334 = vrot.slane %v1251, 7
      %v1335 = vrot.slane %v1011, 7
      %v1336 = vsel %vm1330, %v1334, %v1335
      %v1337 = vrot.slane %v1252, 7
      %v1338 = vrot.slane %v1012, 7
      %v1339 = vsel %vm1330, %v1337, %v1338
      %v1340 = vrot.slane %v1253, 7
      %v1341 = vrot.slane %v1013, 7
      %v1342 = vsel %vm1330, %v1340, %v1341
      %v1343 = vrot.slane %v1014, 7
      %v1344 = vsel %vm1330, %v1332, %v1343
      %v1345 = vrot.slane %v1015, 7
      %v1346 = vsel %vm1330, %v1335, %v1345
      %v1347 = vrot.slane %v1016, 7
      %v1348 = vsel %vm1330, %v1338, %v1347
      %v1349 = vrot.slane %v1017, 7
      %v1350 = vsel %vm1330, %v1341, %v1349
      %v1351 = vrot.slane %v1254, 7
      %v1352 = vsel %vm1330, %v1343, %v1351
      %v1353 = vrot.slane %v1255, 7
      %v1354 = vsel %vm1330, %v1345, %v1353
      %v1355 = vrot.slane %v1256, 7
      %v1356 = vsel %vm1330, %v1347, %v1355
      %v1357 = vrot.slane %v1257, 7
      %v1358 = vsel %vm1330, %v1349, %v1357
      %1371 = vmatpush.msra.mxu0 %v1273
      %1372 = vmatpush.msra.mxu0 %v1272
      %1373 = vmatpush.msra.mxu0 %v1271
      %1374 = vmatpush.msra.mxu0 %v1270
      %1375 = vmatpush.msra.mxu0 %v1269
      %1376 = vmatpush.msra.mxu0 %v1268
      %1377 = vmatpush.msra.mxu0 %v1267
      %1378 = vmatpush.msra.mxu0 %v1266
      %1379 = vmatpush.msra.mxu0 %v1265
      %1380 = vmatpush.msra.mxu0 %v1264
      %1381 = vmatpush.msra.mxu0 %v1263
      %1382 = vmatpush.msra.mxu0 %v1262
      %1383 = vmatpush.msra.mxu0 %v1261
      %1384 = vmatpush.msra.mxu0 %v1260
      %1385 = vmatpush.msra.mxu0 %v1259
      %1386 = vmatpush.msra.mxu0 %v1258
      %1387 = vmatmul.f32.gmra.mxu0 %v1333
      %v1388 = vpop.f32.mrf.mxu0
      %v1389 = vadd.f32 0.0, %v1388
      %1390 = vmatmul.f32.gmra.mxu0 %v1344
      %v1391 = vpop.f32.mrf.mxu0
      %v1392 = vadd.f32 0.0, %v1391
      %1393 = vmatmul.f32.gmra.mxu0 %v1352
      %v1394 = vpop.f32.mrf.mxu0
      %v1395 = vadd.f32 0.0, %v1394
      %1396 = vdwg.mxu0
      %1397 = vmatpush.msra.mxu0 %v1289
      %1398 = vmatpush.msra.mxu0 %v1288
      %1399 = vmatpush.msra.mxu0 %v1287
      %1400 = vmatpush.msra.mxu0 %v1286
      %1401 = vmatpush.msra.mxu0 %v1285
      %1402 = vmatpush.msra.mxu0 %v1284
      %1403 = vmatpush.msra.mxu0 %v1283
      %1404 = vmatpush.msra.mxu0 %v1282
      %1405 = vmatpush.msra.mxu0 %v1281
      %1406 = vmatpush.msra.mxu0 %v1280
      %1407 = vmatpush.msra.mxu0 %v1279
      %1408 = vmatpush.msra.mxu0 %v1278
      %1409 = vmatpush.msra.mxu0 %v1277
      %1410 = vmatpush.msra.mxu0 %v1276
      %1411 = vmatpush.msra.mxu0 %v1275
      %1412 = vmatpush.msra.mxu0 %v1274
      %1413 = vmatmul.f32.gmra.mxu0 %v1336
      %v1414 = vpop.f32.mrf.mxu0
      %v1415 = vadd.f32 %v1389, %v1414
      %1416 = vmatmul.f32.gmra.mxu0 %v1346
      %v1417 = vpop.f32.mrf.mxu0
      %v1418 = vadd.f32 %v1392, %v1417
      %1419 = vmatmul.f32.gmra.mxu0 %v1354
      %v1420 = vpop.f32.mrf.mxu0
      %v1421 = vadd.f32 %v1395, %v1420
      %1422 = vdwg.mxu0
      %1423 = vmatpush.msra.mxu0 %v1305
      %1424 = vmatpush.msra.mxu0 %v1304
      %1425 = vmatpush.msra.mxu0 %v1303
      %1426 = vmatpush.msra.mxu0 %v1302
      %1427 = vmatpush.msra.mxu0 %v1301
      %1428 = vmatpush.msra.mxu0 %v1300
      %1429 = vmatpush.msra.mxu0 %v1299
      %1430 = vmatpush.msra.mxu0 %v1298
      %1431 = vmatpush.msra.mxu0 %v1297
      %1432 = vmatpush.msra.mxu0 %v1296
      %1433 = vmatpush.msra.mxu0 %v1295
      %1434 = vmatpush.msra.mxu0 %v1294
      %1435 = vmatpush.msra.mxu0 %v1293
      %1436 = vmatpush.msra.mxu0 %v1292
      %1437 = vmatpush.msra.mxu0 %v1291
      %1438 = vmatpush.msra.mxu0 %v1290
      %1439 = vmatmul.f32.gmra.mxu0 %v1339
      %v1440 = vpop.f32.mrf.mxu0
      %v1441 = vadd.f32 %v1415, %v1440
      %1442 = vmatmul.f32.gmra.mxu0 %v1348
      %v1443 = vpop.f32.mrf.mxu0
      %v1444 = vadd.f32 %v1418, %v1443
      %1445 = vmatmul.f32.gmra.mxu0 %v1356
      %v1446 = vpop.f32.mrf.mxu0
      %v1447 = vadd.f32 %v1421, %v1446
      %1448 = vdwg.mxu0
      %1449 = vmatpush.msra.mxu0 %v1321
      %1450 = vmatpush.msra.mxu0 %v1320
      %1451 = vmatpush.msra.mxu0 %v1319
      %1452 = vmatpush.msra.mxu0 %v1318
      %1453 = vmatpush.msra.mxu0 %v1317
      %1454 = vmatpush.msra.mxu0 %v1316
      %1455 = vmatpush.msra.mxu0 %v1315
      %1456 = vmatpush.msra.mxu0 %v1314
      %1457 = vmatpush.msra.mxu0 %v1313
      %1458 = vmatpush.msra.mxu0 %v1312
      %1459 = vmatpush.msra.mxu0 %v1311
      %1460 = vmatpush.msra.mxu0 %v1310
      %1461 = vmatpush.msra.mxu0 %v1309
      %1462 = vmatpush.msra.mxu0 %v1308
      %1463 = vmatpush.msra.mxu0 %v1307
      %1464 = vmatpush.msra.mxu0 %v1306
      %1465 = vmatmul.f32.gmra.mxu0 %v1342
      %v1466 = vpop.f32.mrf.mxu0
      %v1467 = vadd.f32 %v1441, %v1466
      %1468 = vmatmul.f32.gmra.mxu0 %v1350
      %v1469 = vpop.f32.mrf.mxu0
      %v1470 = vadd.f32 %v1444, %v1469
      %1471 = vmatmul.f32.gmra.mxu0 %v1358
      %v1472 = vpop.f32.mrf.mxu0
      %v1473 = vadd.f32 %v1447, %v1472
      %1474 = vdwg.mxu0
      %v1475 = vadd.f32 %v1247, %v1467
      %v1476 = vadd.f32 %v1248, %v1470
      %v1477 = vadd.f32 %v1249, %v1473
      %v1478 = vld [vmem:[#allocation2 + $0x60] sm:$0x3f]
      %v1479 = vld [vmem:[#allocation2 + $0x68] sm:$0x3f]
      %v1480 = vld [vmem:[#allocation2 + $0x70] sm:$0x3f]
      %v1481 = vld [vmem:[#allocation2 + $0x78] sm:$0x3f]
      %v1482 = vld [vmem:[%s10] sm:$0xff]
      %v1483 = vld [vmem:[%s10 + $0x8] sm:$0xff]
      %v1484 = vld [vmem:[%s10 + $0x10] sm:$0xff]
      %v1485 = vld [vmem:[%s10 + $0x18] sm:$0xff]
      %v1486 = vld [vmem:[%s10 + $0x20] sm:$0xff]
      %v1487 = vld [vmem:[%s10 + $0x28] sm:$0xff]
      %v1488 = vld [vmem:[%s10 + $0x30] sm:$0xff]
      %v1489 = vld [vmem:[%s10 + $0x38] sm:$0xff]
      %v1490 = vld [vmem:[%s10 + $0x40] sm:$0xff]
      %v1491 = vld [vmem:[%s10 + $0x48] sm:$0xff]
      %v1492 = vld [vmem:[%s10 + $0x50] sm:$0xff]
      %v1493 = vld [vmem:[%s10 + $0x58] sm:$0xff]
      %v1494 = vld [vmem:[%s10 + $0x60] sm:$0xff]
      %v1495 = vld [vmem:[%s10 + $0x68] sm:$0xff]
      %v1496 = vld [vmem:[%s10 + $0x70] sm:$0xff]
      %v1497 = vld [vmem:[%s10 + $0x78] sm:$0xff]
      %v1498 = vld [vmem:[%s10 + $0x80] sm:$0xff]
      %v1499 = vld [vmem:[%s10 + $0x88] sm:$0xff]
      %v1500 = vld [vmem:[%s10 + $0x90] sm:$0xff]
      %v1501 = vld [vmem:[%s10 + $0x98] sm:$0xff]
      %v1502 = vld [vmem:[%s10 + $0xa0] sm:$0xff]
      %v1503 = vld [vmem:[%s10 + $0xa8] sm:$0xff]
      %v1504 = vld [vmem:[%s10 + $0xb0] sm:$0xff]
      %v1505 = vld [vmem:[%s10 + $0xb8] sm:$0xff]
      %v1506 = vld [vmem:[%s10 + $0xc0] sm:$0xff]
      %v1507 = vld [vmem:[%s10 + $0xc8] sm:$0xff]
      %v1508 = vld [vmem:[%s10 + $0xd0] sm:$0xff]
      %v1509 = vld [vmem:[%s10 + $0xd8] sm:$0xff]
      %v1510 = vld [vmem:[%s10 + $0xe0] sm:$0xff]
      %v1511 = vld [vmem:[%s10 + $0xe8] sm:$0xff]
      %v1512 = vld [vmem:[%s10 + $0xf0] sm:$0xff]
      %v1513 = vld [vmem:[%s10 + $0xf8] sm:$0xff]
      %v1514 = vld [vmem:[%s10 + $0x100] sm:$0xff]
      %v1515 = vld [vmem:[%s10 + $0x108] sm:$0xff]
      %v1516 = vld [vmem:[%s10 + $0x110] sm:$0xff]
      %v1517 = vld [vmem:[%s10 + $0x118] sm:$0xff]
      %v1518 = vld [vmem:[%s10 + $0x120] sm:$0xff]
      %v1519 = vld [vmem:[%s10 + $0x128] sm:$0xff]
      %v1520 = vld [vmem:[%s10 + $0x130] sm:$0xff]
      %v1521 = vld [vmem:[%s10 + $0x138] sm:$0xff]
      %v1522 = vld [vmem:[%s10 + $0x140] sm:$0xff]
      %v1523 = vld [vmem:[%s10 + $0x148] sm:$0xff]
      %v1524 = vld [vmem:[%s10 + $0x150] sm:$0xff]
      %v1525 = vld [vmem:[%s10 + $0x158] sm:$0xff]
      %v1526 = vld [vmem:[%s10 + $0x160] sm:$0xff]
      %v1527 = vld [vmem:[%s10 + $0x168] sm:$0xff]
      %v1528 = vld [vmem:[%s10 + $0x170] sm:$0xff]
      %v1529 = vld [vmem:[%s10 + $0x178] sm:$0xff]
      %v1530 = vld [vmem:[%s10 + $0x180] sm:$0xff]
      %v1531 = vld [vmem:[%s10 + $0x188] sm:$0xff]
      %v1532 = vld [vmem:[%s10 + $0x190] sm:$0xff]
      %v1533 = vld [vmem:[%s10 + $0x198] sm:$0xff]
      %v1534 = vld [vmem:[%s10 + $0x1a0] sm:$0xff]
      %v1535 = vld [vmem:[%s10 + $0x1a8] sm:$0xff]
      %v1536 = vld [vmem:[%s10 + $0x1b0] sm:$0xff]
      %v1537 = vld [vmem:[%s10 + $0x1b8] sm:$0xff]
      %v1538 = vld [vmem:[%s10 + $0x1c0] sm:$0xff]
      %v1539 = vld [vmem:[%s10 + $0x1c8] sm:$0xff]
      %v1540 = vld [vmem:[%s10 + $0x1d0] sm:$0xff]
      %v1541 = vld [vmem:[%s10 + $0x1d8] sm:$0xff]
      %v1542 = vld [vmem:[%s10 + $0x1e0] sm:$0xff]
      %v1543 = vld [vmem:[%s10 + $0x1e8] sm:$0xff]
      %v1544 = vld [vmem:[%s10 + $0x1f0] sm:$0xff]
      %v1545 = vld [vmem:[%s10 + $0x1f8] sm:$0xff]
      %1546 = vmatpush.msra.mxu0 %v1497
      %1547 = vmatpush.msra.mxu0 %v1496
      %1548 = vmatpush.msra.mxu0 %v1495
      %1549 = vmatpush.msra.mxu0 %v1494
      %1550 = vmatpush.msra.mxu0 %v1493
      %1551 = vmatpush.msra.mxu0 %v1492
      %1552 = vmatpush.msra.mxu0 %v1491
      %1553 = vmatpush.msra.mxu0 %v1490
      %1554 = vmatpush.msra.mxu0 %v1489
      %1555 = vmatpush.msra.mxu0 %v1488
      %1556 = vmatpush.msra.mxu0 %v1487
      %1557 = vmatpush.msra.mxu0 %v1486
      %1558 = vmatpush.msra.mxu0 %v1485
      %1559 = vmatpush.msra.mxu0 %v1484
      %1560 = vmatpush.msra.mxu0 %v1483
      %1561 = vmatpush.msra.mxu0 %v1482
      %1562 = vmatmul.f32.gmra.mxu0 %v1010
      %v1563 = vpop.f32.mrf.mxu0
      %v1564 = vadd.f32 0.0, %v1563
      %1565 = vmatmul.f32.gmra.mxu0 %v1014
      %v1566 = vpop.f32.mrf.mxu0
      %v1567 = vadd.f32 0.0, %v1566
      %1568 = vmatmul.f32.gmra.mxu0 %v1478
      %v1569 = vpop.f32.mrf.mxu0
      %v1570 = vadd.f32 0.0, %v1569
      %1571 = vdwg.mxu0
      %1572 = vmatpush.msra.mxu0 %v1513
      %1573 = vmatpush.msra.mxu0 %v1512
      %1574 = vmatpush.msra.mxu0 %v1511
      %1575 = vmatpush.msra.mxu0 %v1510
      %1576 = vmatpush.msra.mxu0 %v1509
      %1577 = vmatpush.msra.mxu0 %v1508
      %1578 = vmatpush.msra.mxu0 %v1507
      %1579 = vmatpush.msra.mxu0 %v1506
      %1580 = vmatpush.msra.mxu0 %v1505
      %1581 = vmatpush.msra.mxu0 %v1504
      %1582 = vmatpush.msra.mxu0 %v1503
      %1583 = vmatpush.msra.mxu0 %v1502
      %1584 = vmatpush.msra.mxu0 %v1501
      %1585 = vmatpush.msra.mxu0 %v1500
      %1586 = vmatpush.msra.mxu0 %v1499
      %1587 = vmatpush.msra.mxu0 %v1498
      %1588 = vmatmul.f32.gmra.mxu0 %v1011
      %v1589 = vpop.f32.mrf.mxu0
      %v1590 = vadd.f32 %v1564, %v1589
      %1591 = vmatmul.f32.gmra.mxu0 %v1015
      %v1592 = vpop.f32.mrf.mxu0
      %v1593 = vadd.f32 %v1567, %v1592
      %1594 = vmatmul.f32.gmra.mxu0 %v1479
      %v1595 = vpop.f32.mrf.mxu0
      %v1596 = vadd.f32 %v1570, %v1595
      %1597 = vdwg.mxu0
      %1598 = vmatpush.msra.mxu0 %v1529
      %1599 = vmatpush.msra.mxu0 %v1528
      %1600 = vmatpush.msra.mxu0 %v1527
      %1601 = vmatpush.msra.mxu0 %v1526
      %1602 = vmatpush.msra.mxu0 %v1525
      %1603 = vmatpush.msra.mxu0 %v1524
      %1604 = vmatpush.msra.mxu0 %v1523
      %1605 = vmatpush.msra.mxu0 %v1522
      %1606 = vmatpush.msra.mxu0 %v1521
      %1607 = vmatpush.msra.mxu0 %v1520
      %1608 = vmatpush.msra.mxu0 %v1519
      %1609 = vmatpush.msra.mxu0 %v1518
      %1610 = vmatpush.msra.mxu0 %v1517
      %1611 = vmatpush.msra.mxu0 %v1516
      %1612 = vmatpush.msra.mxu0 %v1515
      %1613 = vmatpush.msra.mxu0 %v1514
      %1614 = vmatmul.f32.gmra.mxu0 %v1012
      %v1615 = vpop.f32.mrf.mxu0
      %v1616 = vadd.f32 %v1590, %v1615
      %1617 = vmatmul.f32.gmra.mxu0 %v1016
      %v1618 = vpop.f32.mrf.mxu0
      %v1619 = vadd.f32 %v1593, %v1618
      %1620 = vmatmul.f32.gmra.mxu0 %v1480
      %v1621 = vpop.f32.mrf.mxu0
      %v1622 = vadd.f32 %v1596, %v1621
      %1623 = vdwg.mxu0
      %1624 = vmatpush.msra.mxu0 %v1545
      %1625 = vmatpush.msra.mxu0 %v1544
      %1626 = vmatpush.msra.mxu0 %v1543
      %1627 = vmatpush.msra.mxu0 %v1542
      %1628 = vmatpush.msra.mxu0 %v1541
      %1629 = vmatpush.msra.mxu0 %v1540
      %1630 = vmatpush.msra.mxu0 %v1539
      %1631 = vmatpush.msra.mxu0 %v1538
      %1632 = vmatpush.msra.mxu0 %v1537
      %1633 = vmatpush.msra.mxu0 %v1536
      %1634 = vmatpush.msra.mxu0 %v1535
      %1635 = vmatpush.msra.mxu0 %v1534
      %1636 = vmatpush.msra.mxu0 %v1533
      %1637 = vmatpush.msra.mxu0 %v1532
      %1638 = vmatpush.msra.mxu0 %v1531
      %1639 = vmatpush.msra.mxu0 %v1530
      %1640 = vmatmul.f32.gmra.mxu0 %v1013
      %v1641 = vpop.f32.mrf.mxu0
      %v1642 = vadd.f32 %v1616, %v1641
      %1643 = vmatmul.f32.gmra.mxu0 %v1017
      %v1644 = vpop.f32.mrf.mxu0
      %v1645 = vadd.f32 %v1619, %v1644
      %1646 = vmatmul.f32.gmra.mxu0 %v1481
      %v1647 = vpop.f32.mrf.mxu0
      %v1648 = vadd.f32 %v1622, %v1647
      %1649 = vdwg.mxu0
      %v1650 = vadd.f32 %v1475, %v1642
      %v1651 = vadd.f32 %v1476, %v1645
      %v1652 = vadd.f32 %v1477, %v1648
      %v1653 = vld [vmem:[#allocation2 + $0x20] sm:$0xf0]
      %v1654 = vld [vmem:[#allocation2 + $0x40] sm:$0xff]
      %v1655 = vld [vmem:[#allocation2 + $0x60] sm:$0xff]
      %v1656 = vld [vmem:[#allocation2 + $0x80] sm:$0x3]
      %v1657 = vld [vmem:[%s11] sm:$0xff]
      %v1658 = vld [vmem:[%s11 + $0x8] sm:$0xff]
      %v1659 = vld [vmem:[%s11 + $0x10] sm:$0xff]
      %v1660 = vld [vmem:[%s11 + $0x18] sm:$0xff]
      %vm1665 = vcmask 1043456
      %v1666 = vrot.slane %v1653, 4
      %v1667 = vrot.slane %v1654, 4
      %v1668 = vsel %vm1665, %v1666, %v1667
      %v1669 = vrot.slane %v1655, 4
      %v1670 = vsel %vm1665, %v1667, %v1669
      %v1671 = vrot.slane %v1656, 4
      %v1672 = vsel %vm1665, %v1669, %v1671
      %1673 = vrot.lane.b32.xlu0 %v1668, 32
      %v1674 = vpop.permute.xlu0 %1673
      %1675 = vrot.lane.b32.xlu0 %v1670, 32
      %v1676 = vpop.permute.xlu0 %1675
      %1677 = vrot.lane.b32.xlu0 %v1672, 32
      %v1678 = vpop.permute.xlu0 %1677
      %v1679 = vsel %vm924, %v1674, 0
      %v1681 = vsel %vm924, %v1676, 0
      %v1683 = vsel %vm924, %v1678, 0
      %1685 = vmatpush.msra.mxu0 0.0
      %1686 = vmatpush.msra.mxu0 0.0
      %1687 = vmatpush.msra.mxu0 0.0
      %1688 = vmatpush.msra.mxu0 0.0
      %1689 = vmatpush.msra.mxu0 0.0
      %1690 = vmatpush.msra.mxu0 0.0
      %1691 = vmatpush.msra.mxu0 0.0
      %1692 = vmatpush.msra.mxu0 0.0
      %1693 = vmatpush.msra.mxu0 0.0
      %1694 = vmatpush.msra.mxu0 0.0
      %1695 = vmatpush.msra.mxu0 0.0
      %1696 = vmatpush.msra.mxu0 0.0
      %1697 = vmatpush.msra.mxu0 %v1660
      %1698 = vmatpush.msra.mxu0 %v1659
      %1699 = vmatpush.msra.mxu0 %v1658
      %1700 = vmatpush.msra.mxu0 %v1657
      %1701 = vmatmul.f32.gmra.mxu0 %v1679
      %v1702 = vpop.f32.mrf.mxu0
      %v1703 = vadd.f32 0.0, %v1702
      %1704 = vmatmul.f32.gmra.mxu0 %v1681
      %v1705 = vpop.f32.mrf.mxu0
      %v1706 = vadd.f32 0.0, %v1705
      %1707 = vmatmul.f32.gmra.mxu0 %v1683
      %v1708 = vpop.f32.mrf.mxu0
      %v1709 = vadd.f32 0.0, %v1708
      %1710 = vdwg.mxu0
      %v1711 = vadd.f32 %v1650, %v1703
      %v1712 = vadd.f32 %v1651, %v1706
      %v1713 = vadd.f32 %v1652, %v1709
      %v1714 = vld [vmem:[#allocation2 + $0x20] sm:$0xe0]
      %v1715 = vld [vmem:[#allocation2 + $0x80] sm:$0x7]
      %v1716 = vld [vmem:[%s12] sm:$0xff]
      %v1717 = vld [vmem:[%s12 + $0x8] sm:$0xff]
      %v1718 = vld [vmem:[%s12 + $0x10] sm:$0xff]
      %v1719 = vld [vmem:[%s12 + $0x18] sm:$0xff]
      %v1720 = vld [vmem:[%s12 + $0x20] sm:$0xff]
      %v1721 = vld [vmem:[%s12 + $0x28] sm:$0xff]
      %v1722 = vld [vmem:[%s12 + $0x30] sm:$0xff]
      %v1723 = vld [vmem:[%s12 + $0x38] sm:$0xff]
      %v1724 = vld [vmem:[%s12 + $0x40] sm:$0xff]
      %v1725 = vld [vmem:[%s12 + $0x48] sm:$0xff]
      %v1726 = vld [vmem:[%s12 + $0x50] sm:$0xff]
      %v1727 = vld [vmem:[%s12 + $0x58] sm:$0xff]
      %v1728 = vld [vmem:[%s12 + $0x60] sm:$0xff]
      %v1729 = vld [vmem:[%s12 + $0x68] sm:$0xff]
      %v1730 = vld [vmem:[%s12 + $0x70] sm:$0xff]
      %v1731 = vld [vmem:[%s12 + $0x78] sm:$0xff]
      %vm1734 = vcmask 1042432
      %v1735 = vrot.slane %v1714, 5
      %v1736 = vrot.slane %v1654, 5
      %v1737 = vsel %vm1734, %v1735, %v1736
      %v1738 = vrot.slane %v1655, 5
      %v1739 = vsel %vm1734, %v1736, %v1738
      %v1740 = vrot.slane %v1715, 5
      %v1741 = vsel %vm1734, %v1738, %v1740
      %1745 = vmatpush.msra.mxu0 %v1731
      %1746 = vmatpush.msra.mxu0 %v1730
      %1747 = vmatpush.msra.mxu0 %v1729
      %1748 = vmatpush.msra.mxu0 %v1728
      %1749 = vmatpush.msra.mxu0 %v1727
      %1750 = vmatpush.msra.mxu0 %v1726
      %1751 = vmatpush.msra.mxu0 %v1725
      %1752 = vmatpush.msra.mxu0 %v1724
      %1753 = vmatpush.msra.mxu0 %v1723
      %1754 = vmatpush.msra.mxu0 %v1722
      %1755 = vmatpush.msra.mxu0 %v1721
      %1756 = vmatpush.msra.mxu0 %v1720
      %1757 = vmatpush.msra.mxu0 %v1719
      %1758 = vmatpush.msra.mxu0 %v1718
      %1759 = vmatpush.msra.mxu0 %v1717
      %1760 = vmatpush.msra.mxu0 %v1716
      %1761 = vmatmul.f32.gmra.mxu0 %v1737
      %v1762 = vpop.f32.mrf.mxu0
      %v1763 = vadd.f32 0.0, %v1762
      %1764 = vmatmul.f32.gmra.mxu0 %v1739
      %v1765 = vpop.f32.mrf.mxu0
      %v1766 = vadd.f32 0.0, %v1765
      %1767 = vmatmul.f32.gmra.mxu0 %v1741
      %v1768 = vpop.f32.mrf.mxu0
      %v1769 = vadd.f32 0.0, %v1768
      %1770 = vdwg.mxu0
      %v1771 = vadd.f32 %v1711, %v1763
      %v1772 = vadd.f32 %v1712, %v1766
      %v1773 = vadd.f32 %v1713, %v1769
      %v1774 = vld [vmem:[#allocation2 + $0x20] sm:$0xc0]
      %v1775 = vld [vmem:[#allocation2 + $0x80] sm:$0xf]
      %v1776 = vld [vmem:[%s13] sm:$0xff]
      %v1777 = vld [vmem:[%s13 + $0x8] sm:$0xff]
      %v1778 = vld [vmem:[%s13 + $0x10] sm:$0xff]
      %v1779 = vld [vmem:[%s13 + $0x18] sm:$0xff]
      %v1782 = vrot.slane %v1774, 6
      %v1783 = vrot.slane %v1654, 6
      %v1784 = vsel %vm1102, %v1782, %v1783
      %v1785 = vrot.slane %v1655, 6
      %v1786 = vsel %vm1102, %v1783, %v1785
      %v1787 = vrot.slane %v1775, 6
      %v1788 = vsel %vm1102, %v1785, %v1787
      %v1789 = vsel %vm924, %v1784, 0
      %v1791 = vsel %vm924, %v1786, 0
      %v1793 = vsel %vm924, %v1788, 0
      %1795 = vmatpush.msra.mxu0 0.0
      %1796 = vmatpush.msra.mxu0 0.0
      %1797 = vmatpush.msra.mxu0 0.0
      %1798 = vmatpush.msra.mxu0 0.0
      %1799 = vmatpush.msra.mxu0 0.0
      %1800 = vmatpush.msra.mxu0 0.0
      %1801 = vmatpush.msra.mxu0 0.0
      %1802 = vmatpush.msra.mxu0 0.0
      %1803 = vmatpush.msra.mxu0 0.0
      %1804 = vmatpush.msra.mxu0 0.0
      %1805 = vmatpush.msra.mxu0 0.0
      %1806 = vmatpush.msra.mxu0 0.0
      %1807 = vmatpush.msra.mxu0 %v1779
      %1808 = vmatpush.msra.mxu0 %v1778
      %1809 = vmatpush.msra.mxu0 %v1777
      %1810 = vmatpush.msra.mxu0 %v1776
      %1811 = vmatmul.f32.gmra.mxu0 %v1789
      %v1812 = vpop.f32.mrf.mxu0
      %v1813 = vadd.f32 0.0, %v1812
      %1814 = vmatmul.f32.gmra.mxu0 %v1791
      %v1815 = vpop.f32.mrf.mxu0
      %v1816 = vadd.f32 0.0, %v1815
      %1817 = vmatmul.f32.gmra.mxu0 %v1793
      %v1818 = vpop.f32.mrf.mxu0
      %v1819 = vadd.f32 0.0, %v1818
      %1820 = vdwg.mxu0
      %v1821 = vadd.f32 %v1771, %v1813
      %v1822 = vadd.f32 %v1772, %v1816
      %v1823 = vadd.f32 %v1773, %v1819
      %v1824 = vld [vmem:[%s14] sm:$0x1]
      %v1826 = vperm.slane %v1824, 0
      %v1828 = vadd.f32 %v1821, %v1826
      %v1829 = vadd.f32 %v1822, %v1826
      %v1830 = vadd.f32 %v1823, %v1826
      %vm1831 = vcmask 130048
      %1832 = vst.msk [vmem:[%s494] sm:$0xff] %vm1831, %v1828
      %1833 = vst.msk [vmem:[%s494 + $0x8] sm:$0xff] %vm1831, %v1829
      %vm1834 = vcmask 128000
      %1835 = vst.msk [vmem:[%s494 + $0x10] sm:$0x3f] %vm1834, %v1830
      %p1836 = scmp.lt.s32.totalorder %s26, 1
      %s1837 = scalar_select %p1836, %s26, 1
      %s1838 = smul.addr %s1837, 3
      %s1839 = smul.addr %s1838, 8
      %s1840 = scalar_lea.vmem %s15, %s1839
      // Predicated region
      $region81: #{grid_decoder_forward.1} parent=79 // pred_check
        %p1841 = pneg %p364
      $region82: #{grid_decoder_forward.1} parent=79 // pred_check_branch
        %1843 = sbr.rel (%p1841) target = $region84
      $region83: #{grid_decoder_forward.1} parent=79 // pred_region
        _
      $region84: #{grid_decoder_forward.1} parent=79 // pred_fallthru
        _
    $region80: #{grid_decoder_forward.1} parent=5 // pred_fallthru
      _
    %p1844 = scmp.le.s32.totalorder 2, %s21
    // Predicated region
    $region85: #{grid_decoder_forward.1} parent=5 // pred_check
      %p1845 = pneg %p1844
    $region86: #{grid_decoder_forward.1} parent=5 // pred_check_branch
      %1847 = sbr.rel (%p1845) target = $region88
    $region87: #{grid_decoder_forward.1} parent=5 // pred_region
      %s1848 = ssub.s32 %s21, 2
      // Predicated region
      $region89: #{grid_decoder_forward.1} parent=87 // pred_check
        %p1849 = pneg %p370
      $region90: #{grid_decoder_forward.1} parent=87 // pred_check_branch
        %1851 = sbr.rel (%p1849) target = $region92
      $region91: #{grid_decoder_forward.1} parent=87 // pred_region
        %p1852 = scmp.lt.s32.totalorder %s27, 1
        %s1853 = scalar_select %p1852, %s27, 1
        %s1854 = smul.addr %s1853, 3
        %s1855 = smul.addr %s1854, 8
        %s1856 = scalar_lea.vmem %s15, %s1855
      $region92: #{grid_decoder_forward.1} parent=87 // pred_fallthru
        _
    $region88: #{grid_decoder_forward.1} parent=5 // pred_fallthru
      _
  $region6: #{grid_decoder_forward.1} parent=0 // loop_footer
    %s25 = sadd.s32 1, %s21
  $region7: #{grid_decoder_forward.1} parent=0 // loop_footer_branch
    %20 = sbr.rel target = $region3
  $region8: #{grid_decoder_forward.1} parent=0 // loop_exit
    _

</llo_original>
